<compile_context>
chip_gen: v7x
topology: tpu7x:2x2x1
jax: 0.10.0
libtpu: 0.0.40
codegen_flags: <defaults>
</compile_context>

<pallas_src>
import functools

import jax
import jax.numpy as jnp
import numpy as np
from jax.experimental import pallas as pl
from jax.experimental.pallas import tpu as pltpu

EPS = 1e-12          # F.normalize eps
SIGMOID_T = 512.0    # RefinementNetwork sigmoid_T


# ---------------------------------------------------------------------------
# Kernel
# ---------------------------------------------------------------------------
def tgm_kernel(x_ref, mask_ref, sreg_ref, w2a_ref, w3a_ref, wfa_ref, pv_ref,
               out_ref, *, T, nb, C, sigmoid_T):
    """One grid step = nb clips, flattened to M = nb*T rows (sublanes)."""
    M = nb * T
    f32 = jnp.float32

    x = x_ref[...].astype(f32)                                # (M, R*C)

    # --- VideoEncoder -------------------------------------------------------
    # region mean on the (otherwise idle) MXU: (M, RC) @ (RC, C)
    t_feats = jnp.dot(x, sreg_ref[...], preferred_element_type=f32)        # (M, C)

    ones_c = jnp.ones((C, 1), f32)                            # lane->column reducer

    # F.normalize(t, dim=-1): x / max(||x||, eps) == x * rsqrt(max(||x||^2, eps^2))
    tsq = jnp.dot(t_feats * t_feats, ones_c, preferred_element_type=f32)   # (M, 1)
    tn = t_feats * jax.lax.rsqrt(jnp.maximum(tsq, EPS * EPS))

    if nb == 1:
        v_feats = jnp.mean(t_feats, axis=0, keepdims=True)                 # (1, C)
        vsq = jnp.sum(v_feats * v_feats, axis=-1, keepdims=True)
        vn_rows = v_feats * jax.lax.rsqrt(jnp.maximum(vsq, EPS * EPS))     # broadcasts
    else:
        # Per-clip time mean + broadcast back via constant 0/1 segment matmuls,
        # built in-kernel from iota compares (no M*nb inputs, no int div/mod).
        col = jax.lax.broadcasted_iota(jnp.int32, (nb, M), 1)
        lo = jax.lax.broadcasted_iota(jnp.int32, (nb, M), 0) * T
        segb = jnp.where((col >= lo) & (col < lo + T), 1.0 / T, 0.0).astype(f32)
        v_feats = jnp.dot(segb, t_feats, preferred_element_type=f32)       # (nb, C)
        vsq = jnp.sum(v_feats * v_feats, axis=-1, keepdims=True)           # (nb, 1)
        vn = v_feats * jax.lax.rsqrt(jnp.maximum(vsq, EPS * EPS))
        row = jax.lax.broadcasted_iota(jnp.int32, (M, nb), 0)
        lo2 = jax.lax.broadcasted_iota(jnp.int32, (M, nb), 1) * T
        seg = ((row >= lo2) & (row < lo2 + T)).astype(f32)                 # (M, nb)
        vn_rows = jnp.dot(seg, vn, preferred_element_type=f32)             # (M, C)

    # TensorDot('bc,btc->bt') as an MXU column dot
    v_t = jnp.dot(tn * vn_rows, ones_c, preferred_element_type=f32)        # (M, 1)

    # --- temporal-shift boundary masks (hoisted, widened once, sliced per use)
    nf = jnp.broadcast_to(mask_ref[:, 0:1], (M, 64))   # 0 at each clip's t == 0
    nl = jnp.broadcast_to(mask_ref[:, 1:2], (M, 64))   # 0 at each clip's t == T-1

    def shift_down(a):        # a[t-1]; zero at clip starts (ConstantPad1d(1, 0))
        return pltpu.roll(a, shift=1, axis=0) * nf[:, :a.shape[-1]]

    def shift_up(a):          # a[t+1]; zero at clip ends
        return pltpu.roll(a, shift=M - 1, axis=0) * nl[:, :a.shape[-1]]

    # --- packed small parameters --------------------------------------------
    pv = pv_ref[...]                                           # (8, 128)
    w1_0 = pv[0:1, 0:32]
    w1_1 = pv[1:2, 0:32]
    w1_2 = pv[2:3, 0:32]
    b1 = pv[3:4, 0:32]
    b2 = pv[4:5, 0:64]
    b3 = pv[5:6, 0:128]
    c10 = pv[6:7, 0:1]       # dot(w1 tap k, wa1) scalars (analytic aconv y1 term)
    c11 = pv[6:7, 1:2]
    c12 = pv[6:7, 2:3]
    cbias = pv[6:7, 3:4]     # dot(b1,wa1)+dot(b2,wa2)+dot(b3,wa3)+waf*bf+ba

    # --- RefinementNetwork ---------------------------------------------------
    # conv1 (1 -> 32, k=3): broadcast form (a K=1/K=3 matmul would waste the MXU)
    sd = shift_down(v_t)
    su = shift_up(v_t)
    y1 = sd * w1_0 + v_t * w1_1 + su * w1_2 + b1                            # (M, 32)
    a1 = jnp.maximum(y1, 0.0)
    s1 = sd * c10 + v_t * c11 + su * c12          # = sum(y1*wa1) - dot(b1,wa1)

    # conv2/conv3 (k=3): ONE fused (M, 3*Cin) @ (3*Cin, Cout+1) matmul per layer.
    # The extra output column is (pre-bias y) @ wa_k, i.e. aconv's h_connect term.
    cat2 = jnp.concatenate([shift_down(a1), a1, shift_up(a1)], axis=-1)     # (M, 96)
    y2a = jnp.dot(cat2, w2a_ref[...], preferred_element_type=f32)           # (M, 65)
    y2 = y2a[:, 0:64] + b2
    s2 = y2a[:, 64:65]
    a2 = jnp.maximum(y2, 0.0)

    cat3 = jnp.concatenate([shift_down(a2), a2, shift_up(a2)], axis=-1)     # (M, 192)
    y3a = jnp.dot(cat3, w3a_ref[...], preferred_element_type=f32)           # (M, 129)
    y3 = y3a[:, 0:128] + b3
    s3 = y3a[:, 128:129]
    a3 = jnp.maximum(y3, 0.0)

    # fconv (128->1, 1x1) folded with its aconv weight: sf = waf * sum(a3 * wf)
    sf = jnp.dot(a3, wfa_ref[...], preferred_element_type=f32)              # (M, 1)

    # aconv (225 -> 1) = s1 + s2 + s3 + sf + folded bias terms; then /T, sigmoid
    ya = s1 + s2 + s3 + sf + cbias
    out_ref[...] = jax.nn.sigmoid(ya * (1.0 / sigmoid_T))                   # (M, 1)


# ---------------------------------------------------------------------------
# Parameters (deterministic, PyTorch-default-style uniform init)
# ---------------------------------------------------------------------------
def make_params(key):
    ks = jax.random.split(key, 10)

    def conv_w(k, cout, cin, ksz):
        bound = 1.0 / np.sqrt(cin * ksz)
        return jax.random.uniform(k, (cout, cin, ksz), jnp.float32, -bound, bound)

    def conv_b(k, cout, cin, ksz):
        bound = 1.0 / np.sqrt(cin * ksz)
        return jax.random.uniform(k, (cout,), jnp.float32, -bound, bound)

    return {
        'w1': conv_w(ks[0], 32, 1, 3),    'b1': conv_b(ks[1], 32, 1, 3),
        'w2': conv_w(ks[2], 64, 32, 3),   'b2': conv_b(ks[3], 64, 32, 3),
        'w3': conv_w(ks[4], 128, 64, 3),  'b3': conv_b(ks[5], 128, 64, 3),
        'wf': conv_w(ks[6], 1, 128, 1),   'bf': conv_b(ks[7], 1, 128, 1),
        'wa': conv_w(ks[8], 1, 225, 1),   'ba': conv_b(ks[9], 1, 225, 1),
    }


def _pack_k3_aug(w, wa_seg):
    """(Cout, Cin, 3) -> (3*Cin, Cout+1). Rows ordered [tap@t-1; tap@t; tap@t+1];
    last column = packed_weight @ wa_seg (the pre-bias aconv h_connect term)."""
    wp = jnp.concatenate([w[:, :, k].T for k in range(3)], axis=0).astype(jnp.float32)
    extra = jnp.dot(wp, wa_seg.reshape(-1, 1).astype(jnp.float32),
                    precision=jax.lax.Precision.HIGHEST)
    return jnp.concatenate([wp, extra], axis=1)


def _pad_row(v, width=128):
    v = jnp.asarray(v, jnp.float32).reshape(-1)
    return jnp.pad(v, (0, width - v.shape[0]))


def _default_num_tensorcores():
    """2 for megacore parts (v4 / v7x share one Pallas grid across 2 TCs), else 1."""
    try:
        kind = jax.devices()[0].device_kind.lower()
    except Exception:
        return 1
    return 2 if ('v7' in kind or '7x' in kind or 'v4' in kind) else 1


def _choose_batch_block(B, T, target_rows, num_tc, sublane):
    """Clips per grid step.  Single-TC: one maximal legal slab.  2-TC parts: prefer
    >=2 (ideally even #) grid steps, but never shrink per-step rows below ~512."""
    divisors = [d for d in range(1, B + 1) if B % d == 0]
    legal = [d for d in divisors if d == B or (d * T) % sublane == 0]
    if not legal:
        legal = [B]

    def pick_max(cands):
        fitting = [d for d in cands if d * T <= target_rows]
        return max(fitting) if fitting else min(cands)

    if num_tc >= 2:
        min_rows = min(512, max(1, (B * T) // 2))
        multi = [d for d in legal if B // d >= 2 and d * T >= min_rows]
        if multi:
            even = [d for d in multi if (B // d) % 2 == 0]
            return pick_max(even if even else multi)
    return pick_max(legal)


# ---------------------------------------------------------------------------
# Wrapper
# ---------------------------------------------------------------------------
def topic_guidance_module(x, params, *, sigmoid_T=SIGMOID_T, target_rows=1024,
                          num_tensorcores=None):
    B, T, R, C = x.shape
    RC = R * C
    if num_tensorcores is None:
        num_tensorcores = _default_num_tensorcores()

    # Lane-dense anchor layout; bf16 anchors stay bf16 (half HBM traffic, f32 math
    # in-kernel), everything else is fed as f32.
    if x.dtype == jnp.bfloat16:
        x_flat = x.reshape(B * T, RC)
        sublane = 16
    else:
        x_flat = x.reshape(B * T, RC).astype(jnp.float32)
        sublane = 8

    nb = _choose_batch_block(B, T, target_rows, num_tensorcores, sublane)
    M = nb * T

    # Constant per-block boundary masks (same pattern for every grid step).
    tpos = np.arange(M) % T
    masks = jnp.asarray(np.stack([tpos != 0, tpos != T - 1], axis=1).astype(np.float32))

    # Constant region-averaging matrix (RC, C): S[r*C + c, c] = 1/R.
    s_region = jnp.asarray(
        ((np.arange(RC)[:, None] % C) == np.arange(C)[None, :]).astype(np.float32) / R)

    # h_connect aconv weight split + folds.
    wa = params['wa'][0, :, 0]                                 # (225,)
    wa1, wa2, wa3, waf = wa[0:32], wa[32:96], wa[96:224], wa[224]
    w2a = _pack_k3_aug(params['w2'], wa2)                      # (96, 65)
    w3a = _pack_k3_aug(params['w3'], wa3)                      # (192, 129)
    wfa = (params['wf'][0, :, 0] * waf).reshape(-1, 1)         # (128, 1)

    hp = jax.lax.Precision.HIGHEST
    c1 = jnp.stack([
        jnp.dot(params['w1'][:, 0, 0], wa1, precision=hp),
        jnp.dot(params['w1'][:, 0, 1], wa1, precision=hp),
        jnp.dot(params['w1'][:, 0, 2], wa1, precision=hp),
        jnp.dot(params['b1'], wa1, precision=hp)
        + jnp.dot(params['b2'], wa2, precision=hp)
        + jnp.dot(params['b3'], wa3, precision=hp)
        + waf * params['bf'][0] + params['ba'][0],
    ])
    pv = jnp.stack([
        _pad_row(params['w1'][:, 0, 0]),     # conv1 tap k=0 (x[t-1])
        _pad_row(params['w1'][:, 0, 1]),     # conv1 tap k=1 (x[t])
        _pad_row(params['w1'][:, 0, 2]),     # conv1 tap k=2 (x[t+1])
        _pad_row(params['b1']),
        _pad_row(params['b2']),
        _pad_row(params['b3']),
        _pad_row(c1),                        # [c10, c11, c12, folded const bias]
    ], axis=0)
    pv = jnp.pad(pv, ((0, 8 - pv.shape[0]), (0, 0)))           # (8, 128)

    kernel = functools.partial(tgm_kernel, T=T, nb=nb, C=C, sigmoid_T=sigmoid_T)

    tg = pl.pallas_call(
        kernel,
        out_shape=jax.ShapeDtypeStruct((B * T, 1), jnp.float32),
        grid=(B // nb,),
        in_specs=[
            pl.BlockSpec((M, RC), lambda i: (i, 0)),           # anchor slab
            pl.BlockSpec(masks.shape, lambda i: (0, 0)),
            pl.BlockSpec(s_region.shape, lambda i: (0, 0)),
            pl.BlockSpec(w2a.shape, lambda i: (0, 0)),
            pl.BlockSpec(w3a.shape, lambda i: (0, 0)),
            pl.BlockSpec(wfa.shape, lambda i: (0, 0)),
            pl.BlockSpec(pv.shape, lambda i: (0, 0)),
        ],
        # TODO(synk): output left as an (M, 1) column block; lane-dense relayout is
        # not worth it (output is <1% of the anchor DMA).
        out_specs=pl.BlockSpec((M, 1), lambda i: (i, 0)),
        compiler_params=pltpu.CompilerParams(
            dimension_semantics=("parallel",),
            vmem_limit_bytes=32 * 1024 * 1024),
    )(x_flat, masks, s_region, w2a, w3a, wfa, pv)

    return {'weights': tg.reshape(B, T, 1, 1)}    # module output for 4-D input


# ---------------------------------------------------------------------------
# Pure-JAX reference for validation
# ---------------------------------------------------------------------------
def _conv1d_ref(x, w, b):
    # x: (B, Cin, T), w: (Cout, Cin, K); zero 'same' padding for K=3, none for K=1
    K = w.shape[2]
    pad = (K - 1) // 2
    xp = jnp.pad(x, ((0, 0), (0, 0), (pad, pad)))
    T = x.shape[2]
    cols = jnp.stack([xp[:, :, k:k + T] for k in range(K)], axis=-1)  # (B,Cin,T,K)
    return jnp.einsum('oik,bitk->bot', w, cols) + b[None, :, None]


def reference_weights(x, params, sigmoid_T=SIGMOID_T):
    def l2n(v):
        return v / jnp.maximum(jnp.linalg.norm(v, axis=-1, keepdims=True), EPS)

    t = x.mean(axis=2)
    v = t.mean(axis=1)
    tn, vn = l2n(t), l2n(v)
    v_t = jnp.einsum('bc,btc->bt', vn, tn)[:, None, :]                 # (B,1,T)
    y1 = _conv1d_ref(v_t, params['w1'], params['b1']); a1 = jax.nn.relu(y1)
    y2 = _conv1d_ref(a1, params['w2'], params['b2']);  a2 = jax.nn.relu(y2)
    y3 = _conv1d_ref(a2, params['w3'], params['b3']);  a3 = jax.nn.relu(y3)
    yf = _conv1d_ref(a3, params['wf'], params['bf'])
    h = jnp.concatenate([y1, y2, y3, yf], axis=1)
    ya = _conv1d_ref(h, params['wa'], params['ba'])
    w = jax.nn.sigmoid(ya / sigmoid_T)                                 # (B,1,T)
    return w[:, 0, :, None, None]                                      # (B,T,1,1)


if __name__ == "__main__":
    key = jax.random.PRNGKey(0)
    kp, k1, k2, k3, k4 = jax.random.split(key, 5)
    params = make_params(kp)

    cases = [
        ((2, 16, 4, 32), jnp.float32, {}, k1),                      # default blocking
        ((4, 24, 4, 32), jnp.float32, dict(target_rows=48), k2),    # multi-step grid
        ((1, 16, 4, 32), jnp.float32, {}, k3),                      # nb == 1 path
        ((4, 32, 4, 32), jnp.bfloat16, {}, k4),                     # bf16 anchor DMA
    ]
    for shape, dt, kwargs, kk in cases:
        x = jax.random.normal(kk, shape, jnp.float32).astype(dt)
        out = topic_guidance_module(x, params, **kwargs)
        w = jax.block_until_ready(out['weights'])
        w_ref = reference_weights(x.astype(jnp.float32), params)
        tol = dict(rtol=1e-4, atol=1e-5) if dt == jnp.float32 else dict(rtol=1e-3, atol=1e-4)
        np.testing.assert_allclose(np.asarray(w), np.asarray(w_ref), **tol)

    print("KERNEL_OK")
</pallas_src>

<mosaic_0001>
module attributes {stable_mosaic.version = 11 : i64} {
  func.func @tgm_kernel(%arg0: i32, %arg1: memref<32x128xf32, #tpu.memory_space<vmem>>, %arg2: memref<32x2xf32, #tpu.memory_space<vmem>>, %arg3: memref<128x32xf32, #tpu.memory_space<vmem>>, %arg4: memref<96x65xf32, #tpu.memory_space<vmem>>, %arg5: memref<192x129xf32, #tpu.memory_space<vmem>>, %arg6: memref<128x1xf32, #tpu.memory_space<vmem>>, %arg7: memref<8x128xf32, #tpu.memory_space<vmem>>, %arg8: memref<32x1xf32, #tpu.memory_space<vmem>>) attributes {dimension_semantics = [#tpu.dimension_semantics<parallel>], iteration_bounds = array<i64: 1>, scalar_prefetch = 0 : i64, scratch_operands = 0 : i64, tpu.core_type = #tpu.core_type<tc>, window_params = [{transform_indices = @transform_0, window_bounds = array<i64: 32, 128>}, {pipeline_mode = #tpu.pipeline_mode<synchronous>, transform_indices = @transform_1, window_bounds = array<i64: 32, 2>}, {pipeline_mode = #tpu.pipeline_mode<synchronous>, transform_indices = @transform_2, window_bounds = array<i64: 128, 32>}, {pipeline_mode = #tpu.pipeline_mode<synchronous>, transform_indices = @transform_3, window_bounds = array<i64: 96, 65>}, {pipeline_mode = #tpu.pipeline_mode<synchronous>, transform_indices = @transform_4, window_bounds = array<i64: 192, 129>}, {pipeline_mode = #tpu.pipeline_mode<synchronous>, transform_indices = @transform_5, window_bounds = array<i64: 128, 1>}, {pipeline_mode = #tpu.pipeline_mode<synchronous>, transform_indices = @transform_6, window_bounds = array<i64: 8, 128>}, {transform_indices = @transform_7, window_bounds = array<i64: 32, 1>}]} {
    %c0 = arith.constant 0 : index
    %c0_0 = arith.constant 0 : index
    %0 = vector.load %arg1[%c0, %c0_0] : memref<32x128xf32, #tpu.memory_space<vmem>>, vector<32x128xf32>
    %c0_1 = arith.constant 0 : index
    %c0_2 = arith.constant 0 : index
    %1 = vector.load %arg3[%c0_1, %c0_2] : memref<128x32xf32, #tpu.memory_space<vmem>>, vector<128x32xf32>
    %cst = arith.constant dense<0.000000e+00> : vector<32x32xf32>
    %2 = tpu.matmul %0, %1, %cst {dimension_numbers = #tpu.dot_dimension_numbers<[1], [0], [0], [1], [0, 0, 1, 1], [], []>} : vector<32x128xf32>, vector<128x32xf32>, vector<32x32xf32> -> vector<32x32xf32>
    %cst_3 = arith.constant 1.000000e+00 : f32
    %3 = vector.broadcast %cst_3 : f32 to vector<32x1xf32>
    %4 = arith.mulf %2, %2 : vector<32x32xf32>
    %cst_4 = arith.constant dense<0.000000e+00> : vector<32x1xf32>
    %5 = tpu.matmul %4, %3, %cst_4 {dimension_numbers = #tpu.dot_dimension_numbers<[1], [0], [0], [1], [0, 0, 1, 1], [], []>} : vector<32x32xf32>, vector<32x1xf32>, vector<32x1xf32> -> vector<32x1xf32>
    %cst_5 = arith.constant 1.000000e-24 : f32
    %6 = vector.broadcast %cst_5 : f32 to vector<32x1xf32>
    %7 = arith.maximumf %5, %6 : vector<32x1xf32>
    %8 = math.rsqrt %7 : vector<32x1xf32>
    %9 = vector.broadcast %8 : vector<32x1xf32> to vector<32x32xf32>
    %10 = arith.mulf %2, %9 : vector<32x32xf32>
    %11 = tpu.iota {dimensions = array<i32: 1>} : vector<2x32xi32>
    %12 = tpu.iota {dimensions = array<i32: 0>} : vector<2x32xi32>
    %c16_i32 = arith.constant 16 : i32
    %13 = vector.broadcast %c16_i32 : i32 to vector<2x32xi32>
    %14 = arith.muli %12, %13 : vector<2x32xi32>
    %15 = arith.cmpi sge, %11, %14 : vector<2x32xi32>
    %c16_i32_6 = arith.constant 16 : i32
    %16 = vector.broadcast %c16_i32_6 : i32 to vector<2x32xi32>
    %17 = arith.addi %14, %16 : vector<2x32xi32>
    %18 = arith.cmpi slt, %11, %17 : vector<2x32xi32>
    %19 = arith.andi %15, %18 : vector<2x32xi1>
    %cst_7 = arith.constant 6.250000e-02 : f32
    %cst_8 = arith.constant 0.000000e+00 : f32
    %20 = vector.broadcast %cst_7 : f32 to vector<2x32xf32>
    %21 = vector.broadcast %cst_8 : f32 to vector<2x32xf32>
    %22 = arith.select %19, %20, %21 : vector<2x32xi1>, vector<2x32xf32>
    %cst_9 = arith.constant dense<0.000000e+00> : vector<2x32xf32>
    %23 = tpu.matmul %22, %2, %cst_9 {dimension_numbers = #tpu.dot_dimension_numbers<[1], [0], [0], [1], [0, 0, 1, 1], [], []>} : vector<2x32xf32>, vector<32x32xf32>, vector<2x32xf32> -> vector<2x32xf32>
    %24 = arith.mulf %23, %23 : vector<2x32xf32>
    %cst_10 = arith.constant dense<0.000000e+00> : vector<2xf32>
    %25 = vector.multi_reduction <add>, %24, %cst_10 [1] : vector<2x32xf32> to vector<2xf32>
    %26 = vector.shape_cast %25 : vector<2xf32> to vector<2x1xf32>
    %cst_11 = arith.constant 1.000000e-24 : f32
    %27 = vector.broadcast %cst_11 : f32 to vector<2x1xf32>
    %28 = arith.maximumf %26, %27 : vector<2x1xf32>
    %29 = math.rsqrt %28 : vector<2x1xf32>
    %30 = vector.broadcast %29 : vector<2x1xf32> to vector<2x32xf32>
    %31 = arith.mulf %23, %30 : vector<2x32xf32>
    %32 = tpu.iota {dimensions = array<i32: 0>} : vector<32x2xi32>
    %33 = tpu.iota {dimensions = array<i32: 1>} : vector<32x2xi32>
    %c16_i32_12 = arith.constant 16 : i32
    %34 = vector.broadcast %c16_i32_12 : i32 to vector<32x2xi32>
    %35 = arith.muli %33, %34 : vector<32x2xi32>
    %36 = arith.cmpi sge, %32, %35 : vector<32x2xi32>
    %c16_i32_13 = arith.constant 16 : i32
    %37 = vector.broadcast %c16_i32_13 : i32 to vector<32x2xi32>
    %38 = arith.addi %35, %37 : vector<32x2xi32>
    %39 = arith.cmpi slt, %32, %38 : vector<32x2xi32>
    %40 = arith.andi %36, %39 : vector<32x2xi1>
    %41 = arith.extui %40 : vector<32x2xi1> to vector<32x2xi32>
    %42 = arith.sitofp %41 : vector<32x2xi32> to vector<32x2xf32>
    %cst_14 = arith.constant dense<0.000000e+00> : vector<32x32xf32>
    %43 = tpu.matmul %42, %31, %cst_14 {dimension_numbers = #tpu.dot_dimension_numbers<[1], [0], [0], [1], [0, 0, 1, 1], [], []>} : vector<32x2xf32>, vector<2x32xf32>, vector<32x32xf32> -> vector<32x32xf32>
    %44 = arith.mulf %10, %43 : vector<32x32xf32>
    %cst_15 = arith.constant dense<0.000000e+00> : vector<32x1xf32>
    %45 = tpu.matmul %44, %3, %cst_15 {dimension_numbers = #tpu.dot_dimension_numbers<[1], [0], [0], [1], [0, 0, 1, 1], [], []>} : vector<32x32xf32>, vector<32x1xf32>, vector<32x1xf32> -> vector<32x1xf32>
    %c0_16 = arith.constant 0 : index
    %c0_17 = arith.constant 0 : index
    %46 = vector.load %arg2[%c0_16, %c0_17] : memref<32x2xf32, #tpu.memory_space<vmem>>, vector<32x1xf32>
    %47 = vector.shape_cast %46 : vector<32x1xf32> to vector<32x1xf32>
    %48 = vector.broadcast %47 : vector<32x1xf32> to vector<32x64xf32>
    %c0_18 = arith.constant 0 : index
    %c1 = arith.constant 1 : index
    %49 = vector.load %arg2[%c0_18, %c1] : memref<32x2xf32, #tpu.memory_space<vmem>>, vector<32x1xf32>
    %50 = vector.shape_cast %49 : vector<32x1xf32> to vector<32x1xf32>
    %51 = vector.broadcast %50 : vector<32x1xf32> to vector<32x64xf32>
    %c0_19 = arith.constant 0 : index
    %c0_20 = arith.constant 0 : index
    %52 = vector.load %arg7[%c0_19, %c0_20] : memref<8x128xf32, #tpu.memory_space<vmem>>, vector<8x128xf32>
    %53 = vector.extract_strided_slice %52 {offsets = [0, 0], sizes = [1, 32], strides = [1, 1]} : vector<8x128xf32> to vector<1x32xf32>
    %54 = vector.extract_strided_slice %52 {offsets = [1, 0], sizes = [1, 32], strides = [1, 1]} : vector<8x128xf32> to vector<1x32xf32>
    %55 = vector.extract_strided_slice %52 {offsets = [2, 0], sizes = [1, 32], strides = [1, 1]} : vector<8x128xf32> to vector<1x32xf32>
    %56 = vector.extract_strided_slice %52 {offsets = [3, 0], sizes = [1, 32], strides = [1, 1]} : vector<8x128xf32> to vector<1x32xf32>
    %57 = vector.extract_strided_slice %52 {offsets = [4, 0], sizes = [1, 64], strides = [1, 1]} : vector<8x128xf32> to vector<1x64xf32>
    %58 = vector.extract_strided_slice %52 {offsets = [5, 0], sizes = [1, 128], strides = [1, 1]} : vector<8x128xf32> to vector<1x128xf32>
    %59 = vector.extract_strided_slice %52 {offsets = [6, 0], sizes = [1, 1], strides = [1, 1]} : vector<8x128xf32> to vector<1x1xf32>
    %60 = vector.extract_strided_slice %52 {offsets = [6, 1], sizes = [1, 1], strides = [1, 1]} : vector<8x128xf32> to vector<1x1xf32>
    %61 = vector.extract_strided_slice %52 {offsets = [6, 2], sizes = [1, 1], strides = [1, 1]} : vector<8x128xf32> to vector<1x1xf32>
    %62 = vector.extract_strided_slice %52 {offsets = [6, 3], sizes = [1, 1], strides = [1, 1]} : vector<8x128xf32> to vector<1x1xf32>
    %c1_i32 = arith.constant 1 : i32
    %63 = tpu.dynamic_rotate %45 by %c1_i32 dim 0 : vector<32x1xf32>, i32 -> vector<32x1xf32>
    %64 = vector.extract_strided_slice %48 {offsets = [0, 0], sizes = [32, 1], strides = [1, 1]} : vector<32x64xf32> to vector<32x1xf32>
    %65 = arith.mulf %63, %64 : vector<32x1xf32>
    %c31_i32 = arith.constant 31 : i32
    %66 = tpu.dynamic_rotate %45 by %c31_i32 dim 0 : vector<32x1xf32>, i32 -> vector<32x1xf32>
    %67 = vector.extract_strided_slice %51 {offsets = [0, 0], sizes = [32, 1], strides = [1, 1]} : vector<32x64xf32> to vector<32x1xf32>
    %68 = arith.mulf %66, %67 : vector<32x1xf32>
    %69 = vector.broadcast %65 : vector<32x1xf32> to vector<32x32xf32>
    %70 = vector.broadcast %53 : vector<1x32xf32> to vector<32x32xf32>
    %71 = arith.mulf %69, %70 : vector<32x32xf32>
    %72 = vector.broadcast %45 : vector<32x1xf32> to vector<32x32xf32>
    %73 = vector.broadcast %54 : vector<1x32xf32> to vector<32x32xf32>
    %74 = arith.mulf %72, %73 : vector<32x32xf32>
    %75 = arith.addf %71, %74 : vector<32x32xf32>
    %76 = vector.broadcast %68 : vector<32x1xf32> to vector<32x32xf32>
    %77 = vector.broadcast %55 : vector<1x32xf32> to vector<32x32xf32>
    %78 = arith.mulf %76, %77 : vector<32x32xf32>
    %79 = arith.addf %75, %78 : vector<32x32xf32>
    %80 = vector.broadcast %56 : vector<1x32xf32> to vector<32x32xf32>
    %81 = arith.addf %79, %80 : vector<32x32xf32>
    %cst_21 = arith.constant 0.000000e+00 : f32
    %82 = vector.broadcast %cst_21 : f32 to vector<32x32xf32>
    %83 = arith.maximumf %81, %82 : vector<32x32xf32>
    %84 = vector.broadcast %59 : vector<1x1xf32> to vector<32x1xf32>
    %85 = arith.mulf %65, %84 : vector<32x1xf32>
    %86 = vector.broadcast %60 : vector<1x1xf32> to vector<32x1xf32>
    %87 = arith.mulf %45, %86 : vector<32x1xf32>
    %88 = arith.addf %85, %87 : vector<32x1xf32>
    %89 = vector.broadcast %61 : vector<1x1xf32> to vector<32x1xf32>
    %90 = arith.mulf %68, %89 : vector<32x1xf32>
    %91 = arith.addf %88, %90 : vector<32x1xf32>
    %c1_i32_22 = arith.constant 1 : i32
    %92 = tpu.dynamic_rotate %83 by %c1_i32_22 dim 0 : vector<32x32xf32>, i32 -> vector<32x32xf32>
    %93 = vector.extract_strided_slice %48 {offsets = [0, 0], sizes = [32, 32], strides = [1, 1]} : vector<32x64xf32> to vector<32x32xf32>
    %94 = arith.mulf %92, %93 : vector<32x32xf32>
    %c31_i32_23 = arith.constant 31 : i32
    %95 = tpu.dynamic_rotate %83 by %c31_i32_23 dim 0 : vector<32x32xf32>, i32 -> vector<32x32xf32>
    %96 = vector.extract_strided_slice %51 {offsets = [0, 0], sizes = [32, 32], strides = [1, 1]} : vector<32x64xf32> to vector<32x32xf32>
    %97 = arith.mulf %95, %96 : vector<32x32xf32>
    %98 = tpu.concatenate %94, %83, %97 in 1 : vector<32x32xf32>, vector<32x32xf32>, vector<32x32xf32> -> vector<32x96xf32>
    %c0_24 = arith.constant 0 : index
    %c0_25 = arith.constant 0 : index
    %99 = vector.load %arg4[%c0_24, %c0_25] : memref<96x65xf32, #tpu.memory_space<vmem>>, vector<96x65xf32>
    %cst_26 = arith.constant dense<0.000000e+00> : vector<32x65xf32>
    %100 = tpu.matmul %98, %99, %cst_26 {dimension_numbers = #tpu.dot_dimension_numbers<[1], [0], [0], [1], [0, 0, 1, 1], [], []>} : vector<32x96xf32>, vector<96x65xf32>, vector<32x65xf32> -> vector<32x65xf32>
    %101 = vector.extract_strided_slice %100 {offsets = [0, 0], sizes = [32, 64], strides = [1, 1]} : vector<32x65xf32> to vector<32x64xf32>
    %102 = vector.broadcast %57 : vector<1x64xf32> to vector<32x64xf32>
    %103 = arith.addf %101, %102 : vector<32x64xf32>
    %104 = vector.extract_strided_slice %100 {offsets = [0, 64], sizes = [32, 1], strides = [1, 1]} : vector<32x65xf32> to vector<32x1xf32>
    %cst_27 = arith.constant 0.000000e+00 : f32
    %105 = vector.broadcast %cst_27 : f32 to vector<32x64xf32>
    %106 = arith.maximumf %103, %105 : vector<32x64xf32>
    %c1_i32_28 = arith.constant 1 : i32
    %107 = tpu.dynamic_rotate %106 by %c1_i32_28 dim 0 : vector<32x64xf32>, i32 -> vector<32x64xf32>
    %108 = arith.mulf %107, %48 : vector<32x64xf32>
    %c31_i32_29 = arith.constant 31 : i32
    %109 = tpu.dynamic_rotate %106 by %c31_i32_29 dim 0 : vector<32x64xf32>, i32 -> vector<32x64xf32>
    %110 = arith.mulf %109, %51 : vector<32x64xf32>
    %111 = tpu.concatenate %108, %106, %110 in 1 : vector<32x64xf32>, vector<32x64xf32>, vector<32x64xf32> -> vector<32x192xf32>
    %c0_30 = arith.constant 0 : index
    %c0_31 = arith.constant 0 : index
    %112 = vector.load %arg5[%c0_30, %c0_31] : memref<192x129xf32, #tpu.memory_space<vmem>>, vector<192x129xf32>
    %cst_32 = arith.constant dense<0.000000e+00> : vector<32x129xf32>
    %113 = tpu.matmul %111, %112, %cst_32 {dimension_numbers = #tpu.dot_dimension_numbers<[1], [0], [0], [1], [0, 0, 1, 1], [], []>} : vector<32x192xf32>, vector<192x129xf32>, vector<32x129xf32> -> vector<32x129xf32>
    %114 = vector.extract_strided_slice %113 {offsets = [0, 0], sizes = [32, 128], strides = [1, 1]} : vector<32x129xf32> to vector<32x128xf32>
    %115 = vector.broadcast %58 : vector<1x128xf32> to vector<32x128xf32>
    %116 = arith.addf %114, %115 : vector<32x128xf32>
    %117 = vector.extract_strided_slice %113 {offsets = [0, 128], sizes = [32, 1], strides = [1, 1]} : vector<32x129xf32> to vector<32x1xf32>
    %cst_33 = arith.constant 0.000000e+00 : f32
    %118 = vector.broadcast %cst_33 : f32 to vector<32x128xf32>
    %119 = arith.maximumf %116, %118 : vector<32x128xf32>
    %c0_34 = arith.constant 0 : index
    %c0_35 = arith.constant 0 : index
    %120 = vector.load %arg6[%c0_34, %c0_35] : memref<128x1xf32, #tpu.memory_space<vmem>>, vector<128x1xf32>
    %cst_36 = arith.constant dense<0.000000e+00> : vector<32x1xf32>
    %121 = tpu.matmul %119, %120, %cst_36 {dimension_numbers = #tpu.dot_dimension_numbers<[1], [0], [0], [1], [0, 0, 1, 1], [], []>} : vector<32x128xf32>, vector<128x1xf32>, vector<32x1xf32> -> vector<32x1xf32>
    %122 = arith.addf %91, %104 : vector<32x1xf32>
    %123 = arith.addf %122, %117 : vector<32x1xf32>
    %124 = arith.addf %123, %121 : vector<32x1xf32>
    %125 = vector.broadcast %62 : vector<1x1xf32> to vector<32x1xf32>
    %126 = arith.addf %124, %125 : vector<32x1xf32>
    %cst_37 = arith.constant 0.001953125 : f32
    %127 = vector.broadcast %cst_37 : f32 to vector<32x1xf32>
    %128 = arith.mulf %126, %127 : vector<32x1xf32>
    %129 = arith.negf %128 : vector<32x1xf32>
    %130 = math.exp %129 : vector<32x1xf32>
    %cst_38 = arith.constant 1.000000e+00 : f32
    %131 = vector.broadcast %cst_38 : f32 to vector<32x1xf32>
    %132 = arith.addf %131, %130 : vector<32x1xf32>
    %133 = arith.divf %131, %132 : vector<32x1xf32>
    %c0_39 = arith.constant 0 : index
    %c0_40 = arith.constant 0 : index
    %134 = vector.load %arg8[%c0_39, %c0_40] : memref<32x1xf32, #tpu.memory_space<vmem>>, vector<32x1xf32>
    tpu.vector_store %arg8[%c0_39, %c0_40], %133 {strides = array<i32>} : memref<32x1xf32, #tpu.memory_space<vmem>>, vector<32x1xf32>,
    return
  }
  func.func @transform_0(%arg0: i32) -> (i32, i32) {
    %c0_i32 = arith.constant 0 : i32
    %c0_i32_0 = arith.constant 0 : i32
    return %arg0, %c0_i32 : i32, i32
  }
  func.func @transform_1(%arg0: i32) -> (i32, i32) {
    %c0_i32 = arith.constant 0 : i32
    %c0_i32_0 = arith.constant 0 : i32
    %c0_i32_1 = arith.constant 0 : i32
    return %c0_i32, %c0_i32_0 : i32, i32
  }
  func.func @transform_2(%arg0: i32) -> (i32, i32) {
    %c0_i32 = arith.constant 0 : i32
    %c0_i32_0 = arith.constant 0 : i32
    %c0_i32_1 = arith.constant 0 : i32
    return %c0_i32, %c0_i32_0 : i32, i32
  }
  func.func @transform_3(%arg0: i32) -> (i32, i32) {
    %c0_i32 = arith.constant 0 : i32
    %c0_i32_0 = arith.constant 0 : i32
    %c0_i32_1 = arith.constant 0 : i32
    return %c0_i32, %c0_i32_0 : i32, i32
  }
  func.func @transform_4(%arg0: i32) -> (i32, i32) {
    %c0_i32 = arith.constant 0 : i32
    %c0_i32_0 = arith.constant 0 : i32
    %c0_i32_1 = arith.constant 0 : i32
    return %c0_i32, %c0_i32_0 : i32, i32
  }
  func.func @transform_5(%arg0: i32) -> (i32, i32) {
    %c0_i32 = arith.constant 0 : i32
    %c0_i32_0 = arith.constant 0 : i32
    %c0_i32_1 = arith.constant 0 : i32
    return %c0_i32, %c0_i32_0 : i32, i32
  }
  func.func @transform_6(%arg0: i32) -> (i32, i32) {
    %c0_i32 = arith.constant 0 : i32
    %c0_i32_0 = arith.constant 0 : i32
    %c0_i32_1 = arith.constant 0 : i32
    return %c0_i32, %c0_i32_0 : i32, i32
  }
  func.func @transform_7(%arg0: i32) -> (i32, i32) {
    %c0_i32 = arith.constant 0 : i32
    %c0_i32_0 = arith.constant 0 : i32
    return %arg0, %c0_i32 : i32, i32
  }
}

</mosaic_0001>

<llo_original>
// kernel: tpu_custom_call.1
$region0: #{tpu_custom_call.1}
  #allocation0 [shape = 'u32[]', space=smem, size = 0x4, offset = 0x4, fixed_abs, tag = 'smem constant byte address 0x4 - core index']
  #allocation1 [shape = 'u32[144,128]{1,0:T(1,128)}', space=vmem, size = 0x12000, scoped, tag = 'internal scratch']
  %s0 = inlined_call_operand.vmem [shape: f32[32,128], index: 0, kind: input, shape index: {}]
  %s1 = inlined_call_operand.vmem [shape: f32[32,2], index: 1, kind: input, shape index: {}]
  %s2 = inlined_call_operand.vmem [shape: f32[128,32], index: 2, kind: input, shape index: {}]
  %s3 = inlined_call_operand.vmem [shape: f32[96,65], index: 3, kind: input, shape index: {}]
  %s4 = inlined_call_operand.vmem [shape: f32[192,129], index: 4, kind: input, shape index: {}]
  %s5 = inlined_call_operand.vmem [shape: f32[128,1], index: 5, kind: input, shape index: {}]
  %s6 = inlined_call_operand.vmem [shape: f32[8,128], index: 6, kind: input, shape index: {}]
  %s7 = inlined_call_operand.vmem [shape: f32[32,1], index: 7, kind: output, shape index: {}]
  %s8 = sld [smem:[#allocation0]]
  $region38: #{tpu_custom_call.1} parent=0
    _
  %s10 = ssub.s32 1, %s8
  %s11 = scalar_select 0, %s10, %s8
  // Predicated region
  $region2: #{tpu_custom_call.1} parent=0 // pred_check
    _
  $region3: #{tpu_custom_call.1} parent=0 // pred_check_branch
    %13 = sbr.rel (0) target = $region5
  $region4: #{tpu_custom_call.1} parent=0 // pred_region
    _
  $region5: #{tpu_custom_call.1} parent=0 // pred_fallthru
    _
  // Predicated region
  $region6: #{tpu_custom_call.1} parent=0 // pred_check
    _
  $region7: #{tpu_custom_call.1} parent=0 // pred_check_branch
    %15 = sbr.rel (0) target = $region9
  $region8: #{tpu_custom_call.1} parent=0 // pred_region
    _
  $region9: #{tpu_custom_call.1} parent=0 // pred_fallthru
    _
  // Predicated region
  $region10: #{tpu_custom_call.1} parent=0 // pred_check
    _
  $region11: #{tpu_custom_call.1} parent=0 // pred_check_branch
    %17 = sbr.rel (0) target = $region13
  $region12: #{tpu_custom_call.1} parent=0 // pred_region
    _
  $region13: #{tpu_custom_call.1} parent=0 // pred_fallthru
    _
  // Predicated region
  $region14: #{tpu_custom_call.1} parent=0 // pred_check
    _
  $region15: #{tpu_custom_call.1} parent=0 // pred_check_branch
    %19 = sbr.rel (0) target = $region17
  $region16: #{tpu_custom_call.1} parent=0 // pred_region
    _
  $region17: #{tpu_custom_call.1} parent=0 // pred_fallthru
    _
  // Predicated region
  $region18: #{tpu_custom_call.1} parent=0 // pred_check
    _
  $region19: #{tpu_custom_call.1} parent=0 // pred_check_branch
    %21 = sbr.rel (0) target = $region21
  $region20: #{tpu_custom_call.1} parent=0 // pred_region
    _
  $region21: #{tpu_custom_call.1} parent=0 // pred_fallthru
    _
  // Predicated region
  $region22: #{tpu_custom_call.1} parent=0 // pred_check
    _
  $region23: #{tpu_custom_call.1} parent=0 // pred_check_branch
    %23 = sbr.rel (0) target = $region25
  $region24: #{tpu_custom_call.1} parent=0 // pred_region
    _
  $region25: #{tpu_custom_call.1} parent=0 // pred_fallthru
    _
  // Predicated region
  $region26: #{tpu_custom_call.1} parent=0 // pred_check
    _
  $region27: #{tpu_custom_call.1} parent=0 // pred_check_branch
    %25 = sbr.rel (0) target = $region29
  $region28: #{tpu_custom_call.1} parent=0 // pred_region
    _
  $region29: #{tpu_custom_call.1} parent=0 // pred_fallthru
    _
  %v26 = vld [vmem:[%s0] sm:$0xff]
  %v27 = vld [vmem:[%s0 + $0x8] sm:$0xff]
  %v28 = vld [vmem:[%s0 + $0x10] sm:$0xff]
  %v29 = vld [vmem:[%s0 + $0x18] sm:$0xff]
  %v30 = vld [vmem:[%s2] sm:$0xff]
  %v31 = vld [vmem:[%s2 + $0x8] sm:$0xff]
  %v32 = vld [vmem:[%s2 + $0x10] sm:$0xff]
  %v33 = vld [vmem:[%s2 + $0x18] sm:$0xff]
  %v34 = vld [vmem:[%s2 + $0x20] sm:$0xff]
  %v35 = vld [vmem:[%s2 + $0x28] sm:$0xff]
  %v36 = vld [vmem:[%s2 + $0x30] sm:$0xff]
  %v37 = vld [vmem:[%s2 + $0x38] sm:$0xff]
  %v38 = vld [vmem:[%s2 + $0x40] sm:$0xff]
  %v39 = vld [vmem:[%s2 + $0x48] sm:$0xff]
  %v40 = vld [vmem:[%s2 + $0x50] sm:$0xff]
  %v41 = vld [vmem:[%s2 + $0x58] sm:$0xff]
  %v42 = vld [vmem:[%s2 + $0x60] sm:$0xff]
  %v43 = vld [vmem:[%s2 + $0x68] sm:$0xff]
  %v44 = vld [vmem:[%s2 + $0x70] sm:$0xff]
  %v45 = vld [vmem:[%s2 + $0x78] sm:$0xff]
  %46 = vmatprep.subr.mxu0 0.0
  %47 = vmatpush1.msra.mxu0 %v30
  %48 = vmatprep.subr.mxu0 0.0
  %49 = vmatpush1.msra.mxu0 %v31
  %50 = vmatprep.subr.mxu0 0.0
  %51 = vmatpush1.msra.mxu0 %v32
  %52 = vmatprep.subr.mxu0 0.0
  %53 = vmatpush1.msra.mxu0 %v33
  %54 = vmatprep.subr.mxu0 0.0
  %55 = vmatpush1.msra.mxu0 %v34
  %56 = vmatprep.subr.mxu0 0.0
  %57 = vmatpush1.msra.mxu0 %v35
  %58 = vmatprep.subr.mxu0 0.0
  %59 = vmatpush1.msra.mxu0 %v36
  %60 = vmatprep.subr.mxu0 0.0
  %61 = vmatpush1.msra.mxu0 %v37
  %62 = vmatprep.subr.mxu0 0.0
  %63 = vmatpush1.msra.mxu0 %v38
  %64 = vmatprep.subr.mxu0 0.0
  %65 = vmatpush1.msra.mxu0 %v39
  %66 = vmatprep.subr.mxu0 0.0
  %67 = vmatpush1.msra.mxu0 %v40
  %68 = vmatprep.subr.mxu0 0.0
  %69 = vmatpush1.msra.mxu0 %v41
  %70 = vmatprep.subr.mxu0 0.0
  %71 = vmatpush1.msra.mxu0 %v42
  %72 = vmatprep.subr.mxu0 0.0
  %73 = vmatpush1.msra.mxu0 %v43
  %74 = vmatprep.subr.mxu0 0.0
  %75 = vmatpush1.msra.mxu0 %v44
  %76 = vmatprep.subr.mxu0 0.0
  %77 = vmatpush1.msra.mxu0 %v45
  %78 = vmatprep.subr.mxu0 0.0
  %79 = vmatpush1.msra.mxu0 0.0
  %80 = vmatprep.subr.mxu0 0.0
  %81 = vmatpush1.msra.mxu0 0.0
  %82 = vmatprep.subr.mxu0 0.0
  %83 = vmatpush1.msra.mxu0 0.0
  %84 = vmatprep.subr.mxu0 0.0
  %85 = vmatpush1.msra.mxu0 0.0
  %86 = vmatprep.subr.mxu0 0.0
  %87 = vmatpush1.msra.mxu0 0.0
  %88 = vmatprep.subr.mxu0 0.0
  %89 = vmatpush1.msra.mxu0 0.0
  %90 = vmatprep.subr.mxu0 0.0
  %91 = vmatpush1.msra.mxu0 0.0
  %92 = vmatprep.subr.mxu0 0.0
  %93 = vmatpush1.msra.mxu0 0.0
  %94 = vmatprep.subr.mxu0 0.0
  %95 = vmatpush1.msra.mxu0 0.0
  %96 = vmatprep.subr.mxu0 0.0
  %97 = vmatpush1.msra.mxu0 0.0
  %98 = vmatprep.subr.mxu0 0.0
  %99 = vmatpush1.msra.mxu0 0.0
  %100 = vmatprep.subr.mxu0 0.0
  %101 = vmatpush1.msra.mxu0 0.0
  %102 = vmatprep.subr.mxu0 0.0
  %103 = vmatpush1.msra.mxu0 0.0
  %104 = vmatprep.subr.mxu0 0.0
  %105 = vmatpush1.msra.mxu0 0.0
  %106 = vmatprep.subr.mxu0 0.0
  %107 = vmatpush1.msra.mxu0 0.0
  %108 = vmatprep.subr.mxu0 0.0
  %109 = vmatpush1.msra.mxu0 0.0
  %110 = vmatprep.mubr.f32.mxu0 0.0
  %111 = vmatmul.mubr.f32.gmra.mrb[0].mxu0 %v26
  %v112 = vpop.f32.mrb[0].mxu0
  %v113 = vadd.f32 0.0, %v112
  %v114 = vpop.f32.mrb[0].mxu0
  %115 = vmatprep.mubr.f32.mxu0 0.0
  %116 = vmatmul.mubr.f32.gmra.mrb[0].mxu0 %v27
  %v117 = vpop.f32.mrb[0].mxu0
  %v118 = vadd.f32 0.0, %v117
  %v119 = vpop.f32.mrb[0].mxu0
  %120 = vmatprep.mubr.f32.mxu0 0.0
  %121 = vmatmul.mubr.f32.gmra.mrb[0].mxu0 %v28
  %v122 = vpop.f32.mrb[0].mxu0
  %v123 = vadd.f32 0.0, %v122
  %v124 = vpop.f32.mrb[0].mxu0
  %125 = vmatprep.mubr.f32.mxu0 0.0
  %126 = vmatmul.mubr.f32.gmra.mrb[0].mxu0 %v29
  %v127 = vpop.f32.mrb[0].mxu0
  %v128 = vadd.f32 0.0, %v127
  %v129 = vpop.f32.mrb[0].mxu0
  %130 = vdwg.mxu0
  %v131 = vmul.f32 %v113, %v113
  %v132 = vmul.f32 %v118, %v118
  %v133 = vmul.f32 %v123, %v123
  %v134 = vmul.f32 %v128, %v128
  %vm135 = vcmask 261120
  %v137 = vsel %vm135, %v131, 0
  %v140 = vsel %vm135, %v132, 0
  %v143 = vsel %vm135, %v133, 0
  %v146 = vsel %vm135, %v134, 0
  %148 = vmatprep.subr.mxu0 0.0
  %149 = vmatpush1.msra.mxu0 1.0
  %150 = vmatprep.subr.mxu0 0.0
  %151 = vmatpush1.msra.mxu0 1.0
  %152 = vmatprep.subr.mxu0 0.0
  %153 = vmatpush1.msra.mxu0 1.0
  %154 = vmatprep.subr.mxu0 0.0
  %155 = vmatpush1.msra.mxu0 1.0
  %156 = vmatprep.subr.mxu0 0.0
  %157 = vmatpush1.msra.mxu0 0.0
  %158 = vmatprep.subr.mxu0 0.0
  %159 = vmatpush1.msra.mxu0 0.0
  %160 = vmatprep.subr.mxu0 0.0
  %161 = vmatpush1.msra.mxu0 0.0
  %162 = vmatprep.subr.mxu0 0.0
  %163 = vmatpush1.msra.mxu0 0.0
  %164 = vmatprep.subr.mxu0 0.0
  %165 = vmatpush1.msra.mxu0 0.0
  %166 = vmatprep.subr.mxu0 0.0
  %167 = vmatpush1.msra.mxu0 0.0
  %168 = vmatprep.subr.mxu0 0.0
  %169 = vmatpush1.msra.mxu0 0.0
  %170 = vmatprep.subr.mxu0 0.0
  %171 = vmatpush1.msra.mxu0 0.0
  %172 = vmatprep.subr.mxu0 0.0
  %173 = vmatpush1.msra.mxu0 0.0
  %174 = vmatprep.subr.mxu0 0.0
  %175 = vmatpush1.msra.mxu0 0.0
  %176 = vmatprep.subr.mxu0 0.0
  %177 = vmatpush1.msra.mxu0 0.0
  %178 = vmatprep.subr.mxu0 0.0
  %179 = vmatpush1.msra.mxu0 0.0
  %180 = vmatprep.subr.mxu0 0.0
  %181 = vmatpush1.msra.mxu0 0.0
  %182 = vmatprep.subr.mxu0 0.0
  %183 = vmatpush1.msra.mxu0 0.0
  %184 = vmatprep.subr.mxu0 0.0
  %185 = vmatpush1.msra.mxu0 0.0
  %186 = vmatprep.subr.mxu0 0.0
  %187 = vmatpush1.msra.mxu0 0.0
  %188 = vmatprep.subr.mxu0 0.0
  %189 = vmatpush1.msra.mxu0 0.0
  %190 = vmatprep.subr.mxu0 0.0
  %191 = vmatpush1.msra.mxu0 0.0
  %192 = vmatprep.subr.mxu0 0.0
  %193 = vmatpush1.msra.mxu0 0.0
  %194 = vmatprep.subr.mxu0 0.0
  %195 = vmatpush1.msra.mxu0 0.0
  %196 = vmatprep.subr.mxu0 0.0
  %197 = vmatpush1.msra.mxu0 0.0
  %198 = vmatprep.subr.mxu0 0.0
  %199 = vmatpush1.msra.mxu0 0.0
  %200 = vmatprep.subr.mxu0 0.0
  %201 = vmatpush1.msra.mxu0 0.0
  %202 = vmatprep.subr.mxu0 0.0
  %203 = vmatpush1.msra.mxu0 0.0
  %204 = vmatprep.subr.mxu0 0.0
  %205 = vmatpush1.msra.mxu0 0.0
  %206 = vmatprep.subr.mxu0 0.0
  %207 = vmatpush1.msra.mxu0 0.0
  %208 = vmatprep.subr.mxu0 0.0
  %209 = vmatpush1.msra.mxu0 0.0
  %210 = vmatprep.subr.mxu0 0.0
  %211 = vmatpush1.msra.mxu0 0.0
  %212 = vmatprep.mubr.f32.mxu0 0.0
  %213 = vmatmul.mubr.f32.gmra.mrb[0].mxu0 %v137
  %v214 = vpop.f32.mrb[0].mxu0
  %v215 = vadd.f32 0.0, %v214
  %v216 = vpop.f32.mrb[0].mxu0
  %217 = vmatprep.mubr.f32.mxu0 0.0
  %218 = vmatmul.mubr.f32.gmra.mrb[0].mxu0 %v140
  %v219 = vpop.f32.mrb[0].mxu0
  %v220 = vadd.f32 0.0, %v219
  %v221 = vpop.f32.mrb[0].mxu0
  %222 = vmatprep.mubr.f32.mxu0 0.0
  %223 = vmatmul.mubr.f32.gmra.mrb[0].mxu0 %v143
  %v224 = vpop.f32.mrb[0].mxu0
  %v225 = vadd.f32 0.0, %v224
  %v226 = vpop.f32.mrb[0].mxu0
  %227 = vmatprep.mubr.f32.mxu0 0.0
  %228 = vmatmul.mubr.f32.gmra.mrb[0].mxu0 %v146
  %v229 = vpop.f32.mrb[0].mxu0
  %v230 = vadd.f32 0.0, %v229
  %v231 = vpop.f32.mrb[0].mxu0
  %232 = vdwg.mxu0
  %v233 = vmax.f32 %v215, 1e-24
  %v234 = vmax.f32 %v220, 1e-24
  %v235 = vmax.f32 %v225, 1e-24
  %v236 = vmax.f32 %v230, 1e-24
  %v237 = vrsqrt.pop %v233
  %v238 = vrsqrt.pop %v234
  %v239 = vrsqrt.pop %v235
  %v240 = vrsqrt.pop %v236
  %242 = vset.pattern.permute.xlu0 0
  %243 = vperm.xlu0 %242, %v237
  %v244 = vpop.permute.xlu0 %243
  %247 = vset.pattern.permute.xlu0 0
  %248 = vperm.xlu0 %247, %v238
  %v249 = vpop.permute.xlu0 %248
  %252 = vset.pattern.permute.xlu0 0
  %253 = vperm.xlu0 %252, %v239
  %v254 = vpop.permute.xlu0 %253
  %257 = vset.pattern.permute.xlu0 0
  %258 = vperm.xlu0 %257, %v240
  %v259 = vpop.permute.xlu0 %258
  %v261 = vmul.f32 %v113, %v244
  %v262 = vmul.f32 %v118, %v249
  %v263 = vmul.f32 %v123, %v254
  %v264 = vmul.f32 %v128, %v259
  %v265 = vlaneseq
  %v266 = vand.u32 %v265, 127
  %v267 = vlaneseq
  %v268 = vshrl.u32 %v267, 7
  %v269 = vmul.u32 %v268, 16
  %vm270 = vcmp.ge.s32.totalorder %v266, %v269
  %v271 = vadd.s32 %v269, 16
  %vm272 = vcmp.lt.s32.totalorder %v266, %v271
  %vm273 = vmand %vm270, %vm272
  %v274 = vsel %vm273, 0.0625, 0.0
  %v276 = vsel %vm135, %v274, 0
  %278 = vmatprep.subr.mxu0 0.0
  %279 = vmatpush1.msra.mxu0 %v113
  %280 = vmatprep.subr.mxu0 0.0
  %281 = vmatpush1.msra.mxu0 %v118
  %282 = vmatprep.subr.mxu0 0.0
  %283 = vmatpush1.msra.mxu0 %v123
  %284 = vmatprep.subr.mxu0 0.0
  %285 = vmatpush1.msra.mxu0 %v128
  %286 = vmatprep.subr.mxu0 0.0
  %287 = vmatpush1.msra.mxu0 0.0
  %288 = vmatprep.subr.mxu0 0.0
  %289 = vmatpush1.msra.mxu0 0.0
  %290 = vmatprep.subr.mxu0 0.0
  %291 = vmatpush1.msra.mxu0 0.0
  %292 = vmatprep.subr.mxu0 0.0
  %293 = vmatpush1.msra.mxu0 0.0
  %294 = vmatprep.subr.mxu0 0.0
  %295 = vmatpush1.msra.mxu0 0.0
  %296 = vmatprep.subr.mxu0 0.0
  %297 = vmatpush1.msra.mxu0 0.0
  %298 = vmatprep.subr.mxu0 0.0
  %299 = vmatpush1.msra.mxu0 0.0
  %300 = vmatprep.subr.mxu0 0.0
  %301 = vmatpush1.msra.mxu0 0.0
  %302 = vmatprep.subr.mxu0 0.0
  %303 = vmatpush1.msra.mxu0 0.0
  %304 = vmatprep.subr.mxu0 0.0
  %305 = vmatpush1.msra.mxu0 0.0
  %306 = vmatprep.subr.mxu0 0.0
  %307 = vmatpush1.msra.mxu0 0.0
  %308 = vmatprep.subr.mxu0 0.0
  %309 = vmatpush1.msra.mxu0 0.0
  %310 = vmatprep.subr.mxu0 0.0
  %311 = vmatpush1.msra.mxu0 0.0
  %312 = vmatprep.subr.mxu0 0.0
  %313 = vmatpush1.msra.mxu0 0.0
  %314 = vmatprep.subr.mxu0 0.0
  %315 = vmatpush1.msra.mxu0 0.0
  %316 = vmatprep.subr.mxu0 0.0
  %317 = vmatpush1.msra.mxu0 0.0
  %318 = vmatprep.subr.mxu0 0.0
  %319 = vmatpush1.msra.mxu0 0.0
  %320 = vmatprep.subr.mxu0 0.0
  %321 = vmatpush1.msra.mxu0 0.0
  %322 = vmatprep.subr.mxu0 0.0
  %323 = vmatpush1.msra.mxu0 0.0
  %324 = vmatprep.subr.mxu0 0.0
  %325 = vmatpush1.msra.mxu0 0.0
  %326 = vmatprep.subr.mxu0 0.0
  %327 = vmatpush1.msra.mxu0 0.0
  %328 = vmatprep.subr.mxu0 0.0
  %329 = vmatpush1.msra.mxu0 0.0
  %330 = vmatprep.subr.mxu0 0.0
  %331 = vmatpush1.msra.mxu0 0.0
  %332 = vmatprep.subr.mxu0 0.0
  %333 = vmatpush1.msra.mxu0 0.0
  %334 = vmatprep.subr.mxu0 0.0
  %335 = vmatpush1.msra.mxu0 0.0
  %336 = vmatprep.subr.mxu0 0.0
  %337 = vmatpush1.msra.mxu0 0.0
  %338 = vmatprep.subr.mxu0 0.0
  %339 = vmatpush1.msra.mxu0 0.0
  %340 = vmatprep.subr.mxu0 0.0
  %341 = vmatpush1.msra.mxu0 0.0
  %342 = vmatprep.mubr.f32.mxu0 0.0
  %343 = vmatmul.mubr.f32.gmra.mrb[0].mxu0 %v276
  %v344 = vpop.f32.mrb[0].mxu0
  %v345 = vadd.f32 0.0, %v344
  %v346 = vpop.f32.mrb[0].mxu0
  %347 = vdwg.mxu0
  %v348 = vmul.f32 %v345, %v345
  %vm349 = vcmask 254976
  %v350 = vsel %vm349, %v348, 0.0
  %351 = vadd.xlane.f32.xlu0 %v350
  %v352 = vpop.xlane.xlu0 %351
  %v353 = vmax.f32 %v352, 1e-24
  %v354 = vrsqrt.pop %v353
  %v355 = vmul.f32 %v345, %v354
  %v356 = vadd.s32 %v268, 8
  %v357 = vadd.s32 %v268, 16
  %v358 = vadd.s32 %v268, 24
  %v359 = vmul.u32 %v266, 16
  %vm360 = vcmp.ge.s32.totalorder %v268, %v359
  %vm361 = vcmp.ge.s32.totalorder %v356, %v359
  %vm362 = vcmp.ge.s32.totalorder %v357, %v359
  %vm363 = vcmp.ge.s32.totalorder %v358, %v359
  %v364 = vadd.s32 %v359, 16
  %vm365 = vcmp.lt.s32.totalorder %v268, %v364
  %vm366 = vcmp.lt.s32.totalorder %v356, %v364
  %vm367 = vcmp.lt.s32.totalorder %v357, %v364
  %vm368 = vcmp.lt.s32.totalorder %v358, %v364
  %vm369 = vmand %vm360, %vm365
  %vm370 = vmand %vm361, %vm366
  %vm371 = vmand %vm362, %vm367
  %vm372 = vmand %vm363, %vm368
  %v373 = vsel %vm369, 1, 0
  %v374 = vsel %vm370, 1, 0
  %v375 = vsel %vm371, 1, 0
  %v376 = vsel %vm372, 1, 0
  %v377 = vcvt.s32.f32 %v373
  %v378 = vcvt.s32.f32 %v374
  %v379 = vcvt.s32.f32 %v375
  %v380 = vcvt.s32.f32 %v376
  %vm381 = vcmask 15360
  %v383 = vsel %vm381, %v377, 0
  %v386 = vsel %vm381, %v378, 0
  %v389 = vsel %vm381, %v379, 0
  %v392 = vsel %vm381, %v380, 0
  %vm394 = vcmask 1041408
  %v396 = vsel %vm394, %v355, 0
  %398 = vmatprep.subr.mxu0 0.0
  %399 = vmatpush1.msra.mxu0 %v396
  %400 = vmatprep.subr.mxu0 0.0
  %401 = vmatpush1.msra.mxu0 0.0
  %402 = vmatprep.subr.mxu0 0.0
  %403 = vmatpush1.msra.mxu0 0.0
  %404 = vmatprep.subr.mxu0 0.0
  %405 = vmatpush1.msra.mxu0 0.0
  %406 = vmatprep.subr.mxu0 0.0
  %407 = vmatpush1.msra.mxu0 0.0
  %408 = vmatprep.subr.mxu0 0.0
  %409 = vmatpush1.msra.mxu0 0.0
  %410 = vmatprep.subr.mxu0 0.0
  %411 = vmatpush1.msra.mxu0 0.0
  %412 = vmatprep.subr.mxu0 0.0
  %413 = vmatpush1.msra.mxu0 0.0
  %414 = vmatprep.subr.mxu0 0.0
  %415 = vmatpush1.msra.mxu0 0.0
  %416 = vmatprep.subr.mxu0 0.0
  %417 = vmatpush1.msra.mxu0 0.0
  %418 = vmatprep.subr.mxu0 0.0
  %419 = vmatpush1.msra.mxu0 0.0
  %420 = vmatprep.subr.mxu0 0.0
  %421 = vmatpush1.msra.mxu0 0.0
  %422 = vmatprep.subr.mxu0 0.0
  %423 = vmatpush1.msra.mxu0 0.0
  %424 = vmatprep.subr.mxu0 0.0
  %425 = vmatpush1.msra.mxu0 0.0
  %426 = vmatprep.subr.mxu0 0.0
  %427 = vmatpush1.msra.mxu0 0.0
  %428 = vmatprep.subr.mxu0 0.0
  %429 = vmatpush1.msra.mxu0 0.0
  %430 = vmatprep.subr.mxu0 0.0
  %431 = vmatpush1.msra.mxu0 0.0
  %432 = vmatprep.subr.mxu0 0.0
  %433 = vmatpush1.msra.mxu0 0.0
  %434 = vmatprep.subr.mxu0 0.0
  %435 = vmatpush1.msra.mxu0 0.0
  %436 = vmatprep.subr.mxu0 0.0
  %437 = vmatpush1.msra.mxu0 0.0
  %438 = vmatprep.subr.mxu0 0.0
  %439 = vmatpush1.msra.mxu0 0.0
  %440 = vmatprep.subr.mxu0 0.0
  %441 = vmatpush1.msra.mxu0 0.0
  %442 = vmatprep.subr.mxu0 0.0
  %443 = vmatpush1.msra.mxu0 0.0
  %444 = vmatprep.subr.mxu0 0.0
  %445 = vmatpush1.msra.mxu0 0.0
  %446 = vmatprep.subr.mxu0 0.0
  %447 = vmatpush1.msra.mxu0 0.0
  %448 = vmatprep.subr.mxu0 0.0
  %449 = vmatpush1.msra.mxu0 0.0
  %450 = vmatprep.subr.mxu0 0.0
  %451 = vmatpush1.msra.mxu0 0.0
  %452 = vmatprep.subr.mxu0 0.0
  %453 = vmatpush1.msra.mxu0 0.0
  %454 = vmatprep.subr.mxu0 0.0
  %455 = vmatpush1.msra.mxu0 0.0
  %456 = vmatprep.subr.mxu0 0.0
  %457 = vmatpush1.msra.mxu0 0.0
  %458 = vmatprep.subr.mxu0 0.0
  %459 = vmatpush1.msra.mxu0 0.0
  %460 = vmatprep.subr.mxu0 0.0
  %461 = vmatpush1.msra.mxu0 0.0
  %462 = vmatprep.mubr.f32.mxu0 0.0
  %463 = vmatmul.mubr.f32.gmra.mrb[0].mxu0 %v383
  %v464 = vpop.f32.mrb[0].mxu0
  %v465 = vadd.f32 0.0, %v464
  %v466 = vpop.f32.mrb[0].mxu0
  %467 = vmatprep.mubr.f32.mxu0 0.0
  %468 = vmatmul.mubr.f32.gmra.mrb[0].mxu0 %v386
  %v469 = vpop.f32.mrb[0].mxu0
  %v470 = vadd.f32 0.0, %v469
  %v471 = vpop.f32.mrb[0].mxu0
  %472 = vmatprep.mubr.f32.mxu0 0.0
  %473 = vmatmul.mubr.f32.gmra.mrb[0].mxu0 %v389
  %v474 = vpop.f32.mrb[0].mxu0
  %v475 = vadd.f32 0.0, %v474
  %v476 = vpop.f32.mrb[0].mxu0
  %477 = vmatprep.mubr.f32.mxu0 0.0
  %478 = vmatmul.mubr.f32.gmra.mrb[0].mxu0 %v392
  %v479 = vpop.f32.mrb[0].mxu0
  %v480 = vadd.f32 0.0, %v479
  %v481 = vpop.f32.mrb[0].mxu0
  %482 = vdwg.mxu0
  %v483 = vmul.f32 %v261, %v465
  %v484 = vmul.f32 %v262, %v470
  %v485 = vmul.f32 %v263, %v475
  %v486 = vmul.f32 %v264, %v480
  %v488 = vsel %vm135, %v483, 0
  %v491 = vsel %vm135, %v484, 0
  %v494 = vsel %vm135, %v485, 0
  %v497 = vsel %vm135, %v486, 0
  %499 = vmatprep.subr.mxu0 0.0
  %500 = vmatpush1.msra.mxu0 1.0
  %501 = vmatprep.subr.mxu0 0.0
  %502 = vmatpush1.msra.mxu0 1.0
  %503 = vmatprep.subr.mxu0 0.0
  %504 = vmatpush1.msra.mxu0 1.0
  %505 = vmatprep.subr.mxu0 0.0
  %506 = vmatpush1.msra.mxu0 1.0
  %507 = vmatprep.subr.mxu0 0.0
  %508 = vmatpush1.msra.mxu0 0.0
  %509 = vmatprep.subr.mxu0 0.0
  %510 = vmatpush1.msra.mxu0 0.0
  %511 = vmatprep.subr.mxu0 0.0
  %512 = vmatpush1.msra.mxu0 0.0
  %513 = vmatprep.subr.mxu0 0.0
  %514 = vmatpush1.msra.mxu0 0.0
  %515 = vmatprep.subr.mxu0 0.0
  %516 = vmatpush1.msra.mxu0 0.0
  %517 = vmatprep.subr.mxu0 0.0
  %518 = vmatpush1.msra.mxu0 0.0
  %519 = vmatprep.subr.mxu0 0.0
  %520 = vmatpush1.msra.mxu0 0.0
  %521 = vmatprep.subr.mxu0 0.0
  %522 = vmatpush1.msra.mxu0 0.0
  %523 = vmatprep.subr.mxu0 0.0
  %524 = vmatpush1.msra.mxu0 0.0
  %525 = vmatprep.subr.mxu0 0.0
  %526 = vmatpush1.msra.mxu0 0.0
  %527 = vmatprep.subr.mxu0 0.0
  %528 = vmatpush1.msra.mxu0 0.0
  %529 = vmatprep.subr.mxu0 0.0
  %530 = vmatpush1.msra.mxu0 0.0
  %531 = vmatprep.subr.mxu0 0.0
  %532 = vmatpush1.msra.mxu0 0.0
  %533 = vmatprep.subr.mxu0 0.0
  %534 = vmatpush1.msra.mxu0 0.0
  %535 = vmatprep.subr.mxu0 0.0
  %536 = vmatpush1.msra.mxu0 0.0
  %537 = vmatprep.subr.mxu0 0.0
  %538 = vmatpush1.msra.mxu0 0.0
  %539 = vmatprep.subr.mxu0 0.0
  %540 = vmatpush1.msra.mxu0 0.0
  %541 = vmatprep.subr.mxu0 0.0
  %542 = vmatpush1.msra.mxu0 0.0
  %543 = vmatprep.subr.mxu0 0.0
  %544 = vmatpush1.msra.mxu0 0.0
  %545 = vmatprep.subr.mxu0 0.0
  %546 = vmatpush1.msra.mxu0 0.0
  %547 = vmatprep.subr.mxu0 0.0
  %548 = vmatpush1.msra.mxu0 0.0
  %549 = vmatprep.subr.mxu0 0.0
  %550 = vmatpush1.msra.mxu0 0.0
  %551 = vmatprep.subr.mxu0 0.0
  %552 = vmatpush1.msra.mxu0 0.0
  %553 = vmatprep.subr.mxu0 0.0
  %554 = vmatpush1.msra.mxu0 0.0
  %555 = vmatprep.subr.mxu0 0.0
  %556 = vmatpush1.msra.mxu0 0.0
  %557 = vmatprep.subr.mxu0 0.0
  %558 = vmatpush1.msra.mxu0 0.0
  %559 = vmatprep.subr.mxu0 0.0
  %560 = vmatpush1.msra.mxu0 0.0
  %561 = vmatprep.subr.mxu0 0.0
  %562 = vmatpush1.msra.mxu0 0.0
  %563 = vmatprep.mubr.f32.mxu0 0.0
  %564 = vmatmul.mubr.f32.gmra.mrb[0].mxu0 %v488
  %v565 = vpop.f32.mrb[0].mxu0
  %v566 = vadd.f32 0.0, %v565
  %v567 = vpop.f32.mrb[0].mxu0
  %568 = vmatprep.mubr.f32.mxu0 0.0
  %569 = vmatmul.mubr.f32.gmra.mrb[0].mxu0 %v491
  %v570 = vpop.f32.mrb[0].mxu0
  %v571 = vadd.f32 0.0, %v570
  %v572 = vpop.f32.mrb[0].mxu0
  %573 = vmatprep.mubr.f32.mxu0 0.0
  %574 = vmatmul.mubr.f32.gmra.mrb[0].mxu0 %v494
  %v575 = vpop.f32.mrb[0].mxu0
  %v576 = vadd.f32 0.0, %v575
  %v577 = vpop.f32.mrb[0].mxu0
  %578 = vmatprep.mubr.f32.mxu0 0.0
  %579 = vmatmul.mubr.f32.gmra.mrb[0].mxu0 %v497
  %v580 = vpop.f32.mrb[0].mxu0
  %v581 = vadd.f32 0.0, %v580
  %v582 = vpop.f32.mrb[0].mxu0
  %583 = vdwg.mxu0
  %v584 = vld [vmem:[%s1] sm:$0xff]
  %v585 = vld [vmem:[%s1 + $0x8] sm:$0xff]
  %v586 = vld [vmem:[%s1 + $0x10] sm:$0xff]
  %v587 = vld [vmem:[%s1 + $0x18] sm:$0xff]
  %589 = vset.pattern.permute.xlu0 0
  %590 = vperm.xlu0 %589, %v584
  %v591 = vpop.permute.xlu0 %590
  %594 = vset.pattern.permute.xlu0 0
  %595 = vperm.xlu0 %594, %v585
  %v596 = vpop.permute.xlu0 %595
  %599 = vset.pattern.permute.xlu0 0
  %600 = vperm.xlu0 %599, %v586
  %v601 = vpop.permute.xlu0 %600
  %604 = vset.pattern.permute.xlu0 0
  %605 = vperm.xlu0 %604, %v587
  %v606 = vpop.permute.xlu0 %605
  %608 = vset.pattern.permute.xlu0 1
  %609 = vperm.xlu0 %608, %v584
  %v610 = vpop.permute.xlu0 %609
  %612 = vset.pattern.permute.xlu0 1
  %613 = vperm.xlu0 %612, %v585
  %v614 = vpop.permute.xlu0 %613
  %616 = vset.pattern.permute.xlu0 1
  %617 = vperm.xlu0 %616, %v586
  %v618 = vpop.permute.xlu0 %617
  %620 = vset.pattern.permute.xlu0 1
  %621 = vperm.xlu0 %620, %v587
  %v622 = vpop.permute.xlu0 %621
  %v624 = vld [vmem:[%s6] sm:$0xff]
  %v625 = vrot.slane %v566, 7
  %v626 = vrot.slane %v571, 7
  %v627 = vrot.slane %v576, 7
  %v628 = vrot.slane %v581, 7
  %vm629 = vcmp.lt.s32.totalorder %v268, 1
  %v630 = vsel %vm629, %v627, %v628
  %v631 = vsel %vm629, %v626, %v627
  %v632 = vsel %vm629, %v625, %v626
  %v633 = vsel %vm629, %v628, %v625
  %v634 = vmul.f32 %v633, %v584
  %v635 = vmul.f32 %v632, %v585
  %v636 = vmul.f32 %v631, %v586
  %v637 = vmul.f32 %v630, %v587
  %v638 = vrot.slane %v566, 1
  %v639 = vrot.slane %v571, 1
  %v640 = vrot.slane %v576, 1
  %v641 = vrot.slane %v581, 1
  %vm642 = vcmp.lt.s32.totalorder %v268, 7
  %v643 = vsel %vm642, %v640, %v641
  %v644 = vsel %vm642, %v639, %v640
  %v645 = vsel %vm642, %v638, %v639
  %v646 = vsel %vm642, %v641, %v638
  %647 = vrot.lane.b32.xlu0 %v584, 127
  %v648 = vpop.permute.xlu0 %647
  %649 = vrot.lane.b32.xlu0 %v585, 127
  %v650 = vpop.permute.xlu0 %649
  %651 = vrot.lane.b32.xlu0 %v586, 127
  %v652 = vpop.permute.xlu0 %651
  %653 = vrot.lane.b32.xlu0 %v587, 127
  %v654 = vpop.permute.xlu0 %653
  %v659 = vmul.f32 %v645, %v648
  %v660 = vmul.f32 %v644, %v650
  %v661 = vmul.f32 %v643, %v652
  %v662 = vmul.f32 %v646, %v654
  %664 = vset.pattern.permute.xlu0 0
  %665 = vperm.xlu0 %664, %v634
  %v666 = vpop.permute.xlu0 %665
  %669 = vset.pattern.permute.xlu0 0
  %670 = vperm.xlu0 %669, %v635
  %v671 = vpop.permute.xlu0 %670
  %674 = vset.pattern.permute.xlu0 0
  %675 = vperm.xlu0 %674, %v636
  %v676 = vpop.permute.xlu0 %675
  %679 = vset.pattern.permute.xlu0 0
  %680 = vperm.xlu0 %679, %v637
  %v681 = vpop.permute.xlu0 %680
  %v683 = vlaneseq
  %v684 = vshrl.u32 %v683, 7
  %v685 = vsub.s32 0, %v684
  %v686 = vrot.slane %v624, %v685
  %v687 = vmul.f32 %v666, %v686
  %v688 = vmul.f32 %v671, %v686
  %v689 = vmul.f32 %v676, %v686
  %v690 = vmul.f32 %v681, %v686
  %692 = vset.pattern.permute.xlu0 0
  %693 = vperm.xlu0 %692, %v566
  %v694 = vpop.permute.xlu0 %693
  %697 = vset.pattern.permute.xlu0 0
  %698 = vperm.xlu0 %697, %v571
  %v699 = vpop.permute.xlu0 %698
  %702 = vset.pattern.permute.xlu0 0
  %703 = vperm.xlu0 %702, %v576
  %v704 = vpop.permute.xlu0 %703
  %707 = vset.pattern.permute.xlu0 0
  %708 = vperm.xlu0 %707, %v581
  %v709 = vpop.permute.xlu0 %708
  %v711 = vlaneseq
  %v712 = vshrl.u32 %v711, 7
  %v713 = vsub.s32 1, %v712
  %v714 = vrot.slane %v624, %v713
  %v715 = vmul.f32 %v694, %v714
  %v716 = vmul.f32 %v699, %v714
  %v717 = vmul.f32 %v704, %v714
  %v718 = vmul.f32 %v709, %v714
  %v719 = vadd.f32 %v687, %v715
  %v720 = vadd.f32 %v688, %v716
  %v721 = vadd.f32 %v689, %v717
  %v722 = vadd.f32 %v690, %v718
  %724 = vset.pattern.permute.xlu0 0
  %725 = vperm.xlu0 %724, %v659
  %v726 = vpop.permute.xlu0 %725
  %729 = vset.pattern.permute.xlu0 0
  %730 = vperm.xlu0 %729, %v660
  %v731 = vpop.permute.xlu0 %730
  %734 = vset.pattern.permute.xlu0 0
  %735 = vperm.xlu0 %734, %v661
  %v736 = vpop.permute.xlu0 %735
  %739 = vset.pattern.permute.xlu0 0
  %740 = vperm.xlu0 %739, %v662
  %v741 = vpop.permute.xlu0 %740
  %v743 = vlaneseq
  %v744 = vshrl.u32 %v743, 7
  %v745 = vsub.s32 2, %v744
  %v746 = vrot.slane %v624, %v745
  %v747 = vmul.f32 %v726, %v746
  %v748 = vmul.f32 %v731, %v746
  %v749 = vmul.f32 %v736, %v746
  %v750 = vmul.f32 %v741, %v746
  %v751 = vadd.f32 %v719, %v747
  %v752 = vadd.f32 %v720, %v748
  %v753 = vadd.f32 %v721, %v749
  %v754 = vadd.f32 %v722, %v750
  %v755 = vlaneseq
  %v756 = vshrl.u32 %v755, 7
  %v757 = vsub.s32 3, %v756
  %v758 = vrot.slane %v624, %v757
  %v759 = vadd.f32 %v751, %v758
  %v760 = vadd.f32 %v752, %v758
  %v761 = vadd.f32 %v753, %v758
  %v762 = vadd.f32 %v754, %v758
  %v763 = vmax.f32 %v759, 0.0
  %v764 = vmax.f32 %v760, 0.0
  %v765 = vmax.f32 %v761, 0.0
  %v766 = vmax.f32 %v762, 0.0
  %v767 = vlaneseq
  %v768 = vshrl.u32 %v767, 7
  %v769 = vsub.s32 6, %v768
  %v770 = vrot.slane %v624, %v769
  %v771 = vmul.f32 %v634, %v770
  %v772 = vmul.f32 %v635, %v770
  %v773 = vmul.f32 %v636, %v770
  %v774 = vmul.f32 %v637, %v770
  %776 = vrot.lane.b32.xlu0 %v770, 127
  %v777 = vpop.permute.xlu0 %776
  %v779 = vmul.f32 %v566, %v777
  %v780 = vmul.f32 %v571, %v777
  %v781 = vmul.f32 %v576, %v777
  %v782 = vmul.f32 %v581, %v777
  %v783 = vadd.f32 %v771, %v779
  %v784 = vadd.f32 %v772, %v780
  %v785 = vadd.f32 %v773, %v781
  %v786 = vadd.f32 %v774, %v782
  %787 = vrot.lane.b32.xlu0 %v770, 126
  %v788 = vpop.permute.xlu0 %787
  %v790 = vmul.f32 %v659, %v788
  %v791 = vmul.f32 %v660, %v788
  %v792 = vmul.f32 %v661, %v788
  %v793 = vmul.f32 %v662, %v788
  %v794 = vadd.f32 %v783, %v790
  %v795 = vadd.f32 %v784, %v791
  %v796 = vadd.f32 %v785, %v792
  %v797 = vadd.f32 %v786, %v793
  %v798 = vrot.slane %v763, 7
  %v799 = vrot.slane %v764, 7
  %v800 = vrot.slane %v765, 7
  %v801 = vrot.slane %v766, 7
  %v802 = vsel %vm629, %v800, %v801
  %v803 = vsel %vm629, %v799, %v800
  %v804 = vsel %vm629, %v798, %v799
  %v805 = vsel %vm629, %v801, %v798
  %v806 = vmul.f32 %v805, %v591
  %v807 = vmul.f32 %v804, %v596
  %v808 = vmul.f32 %v803, %v601
  %v809 = vmul.f32 %v802, %v606
  %v810 = vrot.slane %v763, 1
  %v811 = vrot.slane %v764, 1
  %v812 = vrot.slane %v765, 1
  %v813 = vrot.slane %v766, 1
  %v814 = vsel %vm642, %v812, %v813
  %v815 = vsel %vm642, %v811, %v812
  %v816 = vsel %vm642, %v810, %v811
  %v817 = vsel %vm642, %v813, %v810
  %v818 = vmul.f32 %v816, %v610
  %v819 = vmul.f32 %v815, %v614
  %v820 = vmul.f32 %v814, %v618
  %v821 = vmul.f32 %v817, %v622
  %826 = vrot.lane.b32.xlu0 %v763, 32
  %v827 = vpop.permute.xlu0 %826
  %828 = vrot.lane.b32.xlu0 %v764, 32
  %v829 = vpop.permute.xlu0 %828
  %830 = vrot.lane.b32.xlu0 %v765, 32
  %v831 = vpop.permute.xlu0 %830
  %832 = vrot.lane.b32.xlu0 %v766, 32
  %v833 = vpop.permute.xlu0 %832
  %842 = vrot.lane.b32.xlu0 %v818, 64
  %v843 = vpop.permute.xlu0 %842
  %844 = vrot.lane.b32.xlu0 %v819, 64
  %v845 = vpop.permute.xlu0 %844
  %846 = vrot.lane.b32.xlu0 %v820, 64
  %v847 = vpop.permute.xlu0 %846
  %848 = vrot.lane.b32.xlu0 %v821, 64
  %v849 = vpop.permute.xlu0 %848
  %v854 = vsel %vm135, %v806, %v827
  %v855 = vsel %vm135, %v807, %v829
  %v856 = vsel %vm135, %v808, %v831
  %v857 = vsel %vm135, %v809, %v833
  %vm858 = vcmask 523264
  %v859 = vsel %vm858, %v854, %v843
  %v860 = vsel %vm858, %v855, %v845
  %v861 = vsel %vm858, %v856, %v847
  %v862 = vsel %vm858, %v857, %v849
  %v863 = vld [vmem:[%s3] sm:$0xff]
  %v864 = vld [vmem:[%s3 + $0x8] sm:$0xff]
  %v865 = vld [vmem:[%s3 + $0x10] sm:$0xff]
  %v866 = vld [vmem:[%s3 + $0x18] sm:$0xff]
  %v867 = vld [vmem:[%s3 + $0x20] sm:$0xff]
  %v868 = vld [vmem:[%s3 + $0x28] sm:$0xff]
  %v869 = vld [vmem:[%s3 + $0x30] sm:$0xff]
  %v870 = vld [vmem:[%s3 + $0x38] sm:$0xff]
  %v871 = vld [vmem:[%s3 + $0x40] sm:$0xff]
  %v872 = vld [vmem:[%s3 + $0x48] sm:$0xff]
  %v873 = vld [vmem:[%s3 + $0x50] sm:$0xff]
  %v874 = vld [vmem:[%s3 + $0x58] sm:$0xff]
  %vm875 = vcmask 785408
  %v877 = vsel %vm875, %v859, 0
  %v880 = vsel %vm875, %v860, 0
  %v883 = vsel %vm875, %v861, 0
  %v886 = vsel %vm875, %v862, 0
  %888 = vmatprep.subr.mxu0 0.0
  %889 = vmatpush1.msra.mxu0 %v863
  %890 = vmatprep.subr.mxu0 0.0
  %891 = vmatpush1.msra.mxu0 %v864
  %892 = vmatprep.subr.mxu0 0.0
  %893 = vmatpush1.msra.mxu0 %v865
  %894 = vmatprep.subr.mxu0 0.0
  %895 = vmatpush1.msra.mxu0 %v866
  %896 = vmatprep.subr.mxu0 0.0
  %897 = vmatpush1.msra.mxu0 %v867
  %898 = vmatprep.subr.mxu0 0.0
  %899 = vmatpush1.msra.mxu0 %v868
  %900 = vmatprep.subr.mxu0 0.0
  %901 = vmatpush1.msra.mxu0 %v869
  %902 = vmatprep.subr.mxu0 0.0
  %903 = vmatpush1.msra.mxu0 %v870
  %904 = vmatprep.subr.mxu0 0.0
  %905 = vmatpush1.msra.mxu0 %v871
  %906 = vmatprep.subr.mxu0 0.0
  %907 = vmatpush1.msra.mxu0 %v872
  %908 = vmatprep.subr.mxu0 0.0
  %909 = vmatpush1.msra.mxu0 %v873
  %910 = vmatprep.subr.mxu0 0.0
  %911 = vmatpush1.msra.mxu0 %v874
  %912 = vmatprep.subr.mxu0 0.0
  %913 = vmatpush1.msra.mxu0 0.0
  %914 = vmatprep.subr.mxu0 0.0
  %915 = vmatpush1.msra.mxu0 0.0
  %916 = vmatprep.subr.mxu0 0.0
  %917 = vmatpush1.msra.mxu0 0.0
  %918 = vmatprep.subr.mxu0 0.0
  %919 = vmatpush1.msra.mxu0 0.0
  %920 = vmatprep.subr.mxu0 0.0
  %921 = vmatpush1.msra.mxu0 0.0
  %922 = vmatprep.subr.mxu0 0.0
  %923 = vmatpush1.msra.mxu0 0.0
  %924 = vmatprep.subr.mxu0 0.0
  %925 = vmatpush1.msra.mxu0 0.0
  %926 = vmatprep.subr.mxu0 0.0
  %927 = vmatpush1.msra.mxu0 0.0
  %928 = vmatprep.subr.mxu0 0.0
  %929 = vmatpush1.msra.mxu0 0.0
  %930 = vmatprep.subr.mxu0 0.0
  %931 = vmatpush1.msra.mxu0 0.0
  %932 = vmatprep.subr.mxu0 0.0
  %933 = vmatpush1.msra.mxu0 0.0
  %934 = vmatprep.subr.mxu0 0.0
  %935 = vmatpush1.msra.mxu0 0.0
  %936 = vmatprep.subr.mxu0 0.0
  %937 = vmatpush1.msra.mxu0 0.0
  %938 = vmatprep.subr.mxu0 0.0
  %939 = vmatpush1.msra.mxu0 0.0
  %940 = vmatprep.subr.mxu0 0.0
  %941 = vmatpush1.msra.mxu0 0.0
  %942 = vmatprep.subr.mxu0 0.0
  %943 = vmatpush1.msra.mxu0 0.0
  %944 = vmatprep.subr.mxu0 0.0
  %945 = vmatpush1.msra.mxu0 0.0
  %946 = vmatprep.subr.mxu0 0.0
  %947 = vmatpush1.msra.mxu0 0.0
  %948 = vmatprep.subr.mxu0 0.0
  %949 = vmatpush1.msra.mxu0 0.0
  %950 = vmatprep.subr.mxu0 0.0
  %951 = vmatpush1.msra.mxu0 0.0
  %952 = vmatprep.mubr.f32.mxu0 0.0
  %953 = vmatmul.mubr.f32.gmra.mrb[0].mxu0 %v877
  %v954 = vpop.f32.mrb[0].mxu0
  %v955 = vadd.f32 0.0, %v954
  %v956 = vpop.f32.mrb[0].mxu0
  %957 = vmatprep.mubr.f32.mxu0 0.0
  %958 = vmatmul.mubr.f32.gmra.mrb[0].mxu0 %v880
  %v959 = vpop.f32.mrb[0].mxu0
  %v960 = vadd.f32 0.0, %v959
  %v961 = vpop.f32.mrb[0].mxu0
  %962 = vmatprep.mubr.f32.mxu0 0.0
  %963 = vmatmul.mubr.f32.gmra.mrb[0].mxu0 %v883
  %v964 = vpop.f32.mrb[0].mxu0
  %v965 = vadd.f32 0.0, %v964
  %v966 = vpop.f32.mrb[0].mxu0
  %967 = vmatprep.mubr.f32.mxu0 0.0
  %968 = vmatmul.mubr.f32.gmra.mrb[0].mxu0 %v886
  %v969 = vpop.f32.mrb[0].mxu0
  %v970 = vadd.f32 0.0, %v969
  %v971 = vpop.f32.mrb[0].mxu0
  %972 = vdwg.mxu0
  %v973 = vlaneseq
  %v974 = vshrl.u32 %v973, 7
  %v975 = vsub.s32 4, %v974
  %v976 = vrot.slane %v624, %v975
  %v977 = vadd.f32 %v955, %v976
  %v978 = vadd.f32 %v960, %v976
  %v979 = vadd.f32 %v965, %v976
  %v980 = vadd.f32 %v970, %v976
  %v981 = vmax.f32 %v977, 0.0
  %v982 = vmax.f32 %v978, 0.0
  %v983 = vmax.f32 %v979, 0.0
  %v984 = vmax.f32 %v980, 0.0
  %v985 = vrot.slane %v981, 7
  %v986 = vrot.slane %v982, 7
  %v987 = vrot.slane %v983, 7
  %v988 = vrot.slane %v984, 7
  %v989 = vsel %vm629, %v987, %v988
  %v990 = vsel %vm629, %v986, %v987
  %v991 = vsel %vm629, %v985, %v986
  %v992 = vsel %vm629, %v988, %v985
  %v993 = vmul.f32 %v992, %v591
  %v994 = vmul.f32 %v991, %v596
  %v995 = vmul.f32 %v990, %v601
  %v996 = vmul.f32 %v989, %v606
  %v997 = vrot.slane %v981, 1
  %v998 = vrot.slane %v982, 1
  %v999 = vrot.slane %v983, 1
  %v1000 = vrot.slane %v984, 1
  %v1001 = vsel %vm642, %v999, %v1000
  %v1002 = vsel %vm642, %v998, %v999
  %v1003 = vsel %vm642, %v997, %v998
  %v1004 = vsel %vm642, %v1000, %v997
  %v1005 = vmul.f32 %v1003, %v610
  %v1006 = vmul.f32 %v1002, %v614
  %v1007 = vmul.f32 %v1001, %v618
  %v1008 = vmul.f32 %v1004, %v622
  %1013 = vrot.lane.b32.xlu0 %v981, 64
  %v1014 = vpop.permute.xlu0 %1013
  %1015 = vrot.lane.b32.xlu0 %v982, 64
  %v1016 = vpop.permute.xlu0 %1015
  %1017 = vrot.lane.b32.xlu0 %v983, 64
  %v1018 = vpop.permute.xlu0 %1017
  %1019 = vrot.lane.b32.xlu0 %v984, 64
  %v1020 = vpop.permute.xlu0 %1019
  %v1025 = vsel %vm858, %v993, %v1014
  %v1026 = vsel %vm858, %v994, %v1016
  %v1027 = vsel %vm858, %v995, %v1018
  %v1028 = vsel %vm858, %v996, %v1020
  %v1029 = vld [vmem:[%s4] sm:$0xff]
  %v1030 = vld [vmem:[%s4 + $0x8] sm:$0xff]
  %v1031 = vld [vmem:[%s4 + $0x10] sm:$0xff]
  %v1032 = vld [vmem:[%s4 + $0x18] sm:$0xff]
  %v1033 = vld [vmem:[%s4 + $0x20] sm:$0xff]
  %v1034 = vld [vmem:[%s4 + $0x28] sm:$0xff]
  %v1035 = vld [vmem:[%s4 + $0x30] sm:$0xff]
  %v1036 = vld [vmem:[%s4 + $0x38] sm:$0xff]
  %v1037 = vld [vmem:[%s4 + $0x40] sm:$0xff]
  %v1038 = vld [vmem:[%s4 + $0x48] sm:$0xff]
  %v1039 = vld [vmem:[%s4 + $0x50] sm:$0xff]
  %v1040 = vld [vmem:[%s4 + $0x58] sm:$0xff]
  %v1041 = vld [vmem:[%s4 + $0x60] sm:$0xff]
  %v1042 = vld [vmem:[%s4 + $0x68] sm:$0xff]
  %v1043 = vld [vmem:[%s4 + $0x70] sm:$0xff]
  %v1044 = vld [vmem:[%s4 + $0x78] sm:$0xff]
  %v1045 = vld [vmem:[%s4 + $0x80] sm:$0xff]
  %v1046 = vld [vmem:[%s4 + $0x88] sm:$0xff]
  %v1047 = vld [vmem:[%s4 + $0x90] sm:$0xff]
  %v1048 = vld [vmem:[%s4 + $0x98] sm:$0xff]
  %v1049 = vld [vmem:[%s4 + $0xa0] sm:$0xff]
  %v1050 = vld [vmem:[%s4 + $0xa8] sm:$0xff]
  %v1051 = vld [vmem:[%s4 + $0xb0] sm:$0xff]
  %v1052 = vld [vmem:[%s4 + $0xb8] sm:$0xff]
  %v1053 = vld [vmem:[%s4 + $0xc0] sm:$0xff]
  %v1054 = vld [vmem:[%s4 + $0xc8] sm:$0xff]
  %v1055 = vld [vmem:[%s4 + $0xd0] sm:$0xff]
  %v1056 = vld [vmem:[%s4 + $0xd8] sm:$0xff]
  %v1057 = vld [vmem:[%s4 + $0xe0] sm:$0xff]
  %v1058 = vld [vmem:[%s4 + $0xe8] sm:$0xff]
  %v1059 = vld [vmem:[%s4 + $0xf0] sm:$0xff]
  %v1060 = vld [vmem:[%s4 + $0xf8] sm:$0xff]
  %v1061 = vld [vmem:[%s4 + $0x100] sm:$0xff]
  %v1062 = vld [vmem:[%s4 + $0x108] sm:$0xff]
  %v1063 = vld [vmem:[%s4 + $0x110] sm:$0xff]
  %v1064 = vld [vmem:[%s4 + $0x118] sm:$0xff]
  %v1065 = vld [vmem:[%s4 + $0x120] sm:$0xff]
  %v1066 = vld [vmem:[%s4 + $0x128] sm:$0xff]
  %v1067 = vld [vmem:[%s4 + $0x130] sm:$0xff]
  %v1068 = vld [vmem:[%s4 + $0x138] sm:$0xff]
  %v1069 = vld [vmem:[%s4 + $0x140] sm:$0xff]
  %v1070 = vld [vmem:[%s4 + $0x148] sm:$0xff]
  %v1071 = vld [vmem:[%s4 + $0x150] sm:$0xff]
  %v1072 = vld [vmem:[%s4 + $0x158] sm:$0xff]
  %v1073 = vld [vmem:[%s4 + $0x160] sm:$0xff]
  %v1074 = vld [vmem:[%s4 + $0x168] sm:$0xff]
  %v1075 = vld [vmem:[%s4 + $0x170] sm:$0xff]
  %v1076 = vld [vmem:[%s4 + $0x178] sm:$0xff]
  %v1078 = vsel %vm858, %v1005, 0
  %v1081 = vsel %vm858, %v1006, 0
  %v1084 = vsel %vm858, %v1007, 0
  %v1087 = vsel %vm858, %v1008, 0
  %1089 = vmatprep.subr.mxu0 %v1030
  %1090 = vmatpush1.msra.mxu0 %v1029
  %1091 = vmatprep.subr.mxu0 %v1032
  %1092 = vmatpush1.msra.mxu0 %v1031
  %1093 = vmatprep.subr.mxu0 %v1034
  %1094 = vmatpush1.msra.mxu0 %v1033
  %1095 = vmatprep.subr.mxu0 %v1036
  %1096 = vmatpush1.msra.mxu0 %v1035
  %1097 = vmatprep.subr.mxu0 %v1038
  %1098 = vmatpush1.msra.mxu0 %v1037
  %1099 = vmatprep.subr.mxu0 %v1040
  %1100 = vmatpush1.msra.mxu0 %v1039
  %1101 = vmatprep.subr.mxu0 %v1042
  %1102 = vmatpush1.msra.mxu0 %v1041
  %1103 = vmatprep.subr.mxu0 %v1044
  %1104 = vmatpush1.msra.mxu0 %v1043
  %1105 = vmatprep.subr.mxu0 %v1046
  %1106 = vmatpush1.msra.mxu0 %v1045
  %1107 = vmatprep.subr.mxu0 %v1048
  %1108 = vmatpush1.msra.mxu0 %v1047
  %1109 = vmatprep.subr.mxu0 %v1050
  %1110 = vmatpush1.msra.mxu0 %v1049
  %1111 = vmatprep.subr.mxu0 %v1052
  %1112 = vmatpush1.msra.mxu0 %v1051
  %1113 = vmatprep.subr.mxu0 %v1054
  %1114 = vmatpush1.msra.mxu0 %v1053
  %1115 = vmatprep.subr.mxu0 %v1056
  %1116 = vmatpush1.msra.mxu0 %v1055
  %1117 = vmatprep.subr.mxu0 %v1058
  %1118 = vmatpush1.msra.mxu0 %v1057
  %1119 = vmatprep.subr.mxu0 %v1060
  %1120 = vmatpush1.msra.mxu0 %v1059
  %1121 = vmatprep.subr.mxu0 %v1062
  %1122 = vmatpush1.msra.mxu0 %v1061
  %1123 = vmatprep.subr.mxu0 %v1064
  %1124 = vmatpush1.msra.mxu0 %v1063
  %1125 = vmatprep.subr.mxu0 %v1066
  %1126 = vmatpush1.msra.mxu0 %v1065
  %1127 = vmatprep.subr.mxu0 %v1068
  %1128 = vmatpush1.msra.mxu0 %v1067
  %1129 = vmatprep.subr.mxu0 %v1070
  %1130 = vmatpush1.msra.mxu0 %v1069
  %1131 = vmatprep.subr.mxu0 %v1072
  %1132 = vmatpush1.msra.mxu0 %v1071
  %1133 = vmatprep.subr.mxu0 %v1074
  %1134 = vmatpush1.msra.mxu0 %v1073
  %1135 = vmatprep.subr.mxu0 %v1076
  %1136 = vmatpush1.msra.mxu0 %v1075
  %1137 = vmatprep.subr.mxu0 0.0
  %1138 = vmatpush1.msra.mxu0 0.0
  %1139 = vmatprep.subr.mxu0 0.0
  %1140 = vmatpush1.msra.mxu0 0.0
  %1141 = vmatprep.subr.mxu0 0.0
  %1142 = vmatpush1.msra.mxu0 0.0
  %1143 = vmatprep.subr.mxu0 0.0
  %1144 = vmatpush1.msra.mxu0 0.0
  %1145 = vmatprep.subr.mxu0 0.0
  %1146 = vmatpush1.msra.mxu0 0.0
  %1147 = vmatprep.subr.mxu0 0.0
  %1148 = vmatpush1.msra.mxu0 0.0
  %1149 = vmatprep.subr.mxu0 0.0
  %1150 = vmatpush1.msra.mxu0 0.0
  %1151 = vmatprep.subr.mxu0 0.0
  %1152 = vmatpush1.msra.mxu0 0.0
  %1153 = vmatprep.mubr.f32.mxu0 %v1078
  %1154 = vmatmul.mubr.f32.gmra.mrb[0].mxu0 %v1025
  %v1155 = vpop.f32.mrb[0].mxu0
  %v1156 = vadd.f32 0.0, %v1155
  %v1157 = vpop.f32.mrb[0].mxu0
  %v1158 = vadd.f32 0.0, %v1157
  %1159 = vmatprep.mubr.f32.mxu0 %v1081
  %1160 = vmatmul.mubr.f32.gmra.mrb[0].mxu0 %v1026
  %v1161 = vpop.f32.mrb[0].mxu0
  %v1162 = vadd.f32 0.0, %v1161
  %v1163 = vpop.f32.mrb[0].mxu0
  %v1164 = vadd.f32 0.0, %v1163
  %1165 = vmatprep.mubr.f32.mxu0 %v1084
  %1166 = vmatmul.mubr.f32.gmra.mrb[0].mxu0 %v1027
  %v1167 = vpop.f32.mrb[0].mxu0
  %v1168 = vadd.f32 0.0, %v1167
  %v1169 = vpop.f32.mrb[0].mxu0
  %v1170 = vadd.f32 0.0, %v1169
  %1171 = vmatprep.mubr.f32.mxu0 %v1087
  %1172 = vmatmul.mubr.f32.gmra.mrb[0].mxu0 %v1028
  %v1173 = vpop.f32.mrb[0].mxu0
  %v1174 = vadd.f32 0.0, %v1173
  %v1175 = vpop.f32.mrb[0].mxu0
  %v1176 = vadd.f32 0.0, %v1175
  %1177 = vdwg.mxu0
  %v1178 = vlaneseq
  %v1179 = vshrl.u32 %v1178, 7
  %v1180 = vsub.s32 5, %v1179
  %v1181 = vrot.slane %v624, %v1180
  %v1182 = vadd.f32 %v1156, %v1181
  %v1183 = vadd.f32 %v1162, %v1181
  %v1184 = vadd.f32 %v1168, %v1181
  %v1185 = vadd.f32 %v1174, %v1181
  %v1186 = vmax.f32 %v1182, 0.0
  %v1187 = vmax.f32 %v1183, 0.0
  %v1188 = vmax.f32 %v1184, 0.0
  %v1189 = vmax.f32 %v1185, 0.0
  %v1190 = vld [vmem:[%s5] sm:$0xff]
  %v1191 = vld [vmem:[%s5 + $0x8] sm:$0xff]
  %v1192 = vld [vmem:[%s5 + $0x10] sm:$0xff]
  %v1193 = vld [vmem:[%s5 + $0x18] sm:$0xff]
  %v1194 = vld [vmem:[%s5 + $0x20] sm:$0xff]
  %v1195 = vld [vmem:[%s5 + $0x28] sm:$0xff]
  %v1196 = vld [vmem:[%s5 + $0x30] sm:$0xff]
  %v1197 = vld [vmem:[%s5 + $0x38] sm:$0xff]
  %v1198 = vld [vmem:[%s5 + $0x40] sm:$0xff]
  %v1199 = vld [vmem:[%s5 + $0x48] sm:$0xff]
  %v1200 = vld [vmem:[%s5 + $0x50] sm:$0xff]
  %v1201 = vld [vmem:[%s5 + $0x58] sm:$0xff]
  %v1202 = vld [vmem:[%s5 + $0x60] sm:$0xff]
  %v1203 = vld [vmem:[%s5 + $0x68] sm:$0xff]
  %v1204 = vld [vmem:[%s5 + $0x70] sm:$0xff]
  %v1205 = vld [vmem:[%s5 + $0x78] sm:$0xff]
  %1206 = vmatprep.subr.mxu0 0.0
  %1207 = vmatpush1.msra.mxu0 %v1190
  %1208 = vmatprep.subr.mxu0 0.0
  %1209 = vmatpush1.msra.mxu0 %v1191
  %1210 = vmatprep.subr.mxu0 0.0
  %1211 = vmatpush1.msra.mxu0 %v1192
  %1212 = vmatprep.subr.mxu0 0.0
  %1213 = vmatpush1.msra.mxu0 %v1193
  %1214 = vmatprep.subr.mxu0 0.0
  %1215 = vmatpush1.msra.mxu0 %v1194
  %1216 = vmatprep.subr.mxu0 0.0
  %1217 = vmatpush1.msra.mxu0 %v1195
  %1218 = vmatprep.subr.mxu0 0.0
  %1219 = vmatpush1.msra.mxu0 %v1196
  %1220 = vmatprep.subr.mxu0 0.0
  %1221 = vmatpush1.msra.mxu0 %v1197
  %1222 = vmatprep.subr.mxu0 0.0
  %1223 = vmatpush1.msra.mxu0 %v1198
  %1224 = vmatprep.subr.mxu0 0.0
  %1225 = vmatpush1.msra.mxu0 %v1199
  %1226 = vmatprep.subr.mxu0 0.0
  %1227 = vmatpush1.msra.mxu0 %v1200
  %1228 = vmatprep.subr.mxu0 0.0
  %1229 = vmatpush1.msra.mxu0 %v1201
  %1230 = vmatprep.subr.mxu0 0.0
  %1231 = vmatpush1.msra.mxu0 %v1202
  %1232 = vmatprep.subr.mxu0 0.0
  %1233 = vmatpush1.msra.mxu0 %v1203
  %1234 = vmatprep.subr.mxu0 0.0
  %1235 = vmatpush1.msra.mxu0 %v1204
  %1236 = vmatprep.subr.mxu0 0.0
  %1237 = vmatpush1.msra.mxu0 %v1205
  %1238 = vmatprep.subr.mxu0 0.0
  %1239 = vmatpush1.msra.mxu0 0.0
  %1240 = vmatprep.subr.mxu0 0.0
  %1241 = vmatpush1.msra.mxu0 0.0
  %1242 = vmatprep.subr.mxu0 0.0
  %1243 = vmatpush1.msra.mxu0 0.0
  %1244 = vmatprep.subr.mxu0 0.0
  %1245 = vmatpush1.msra.mxu0 0.0
  %1246 = vmatprep.subr.mxu0 0.0
  %1247 = vmatpush1.msra.mxu0 0.0
  %1248 = vmatprep.subr.mxu0 0.0
  %1249 = vmatpush1.msra.mxu0 0.0
  %1250 = vmatprep.subr.mxu0 0.0
  %1251 = vmatpush1.msra.mxu0 0.0
  %1252 = vmatprep.subr.mxu0 0.0
  %1253 = vmatpush1.msra.mxu0 0.0
  %1254 = vmatprep.subr.mxu0 0.0
  %1255 = vmatpush1.msra.mxu0 0.0
  %1256 = vmatprep.subr.mxu0 0.0
  %1257 = vmatpush1.msra.mxu0 0.0
  %1258 = vmatprep.subr.mxu0 0.0
  %1259 = vmatpush1.msra.mxu0 0.0
  %1260 = vmatprep.subr.mxu0 0.0
  %1261 = vmatpush1.msra.mxu0 0.0
  %1262 = vmatprep.subr.mxu0 0.0
  %1263 = vmatpush1.msra.mxu0 0.0
  %1264 = vmatprep.subr.mxu0 0.0
  %1265 = vmatpush1.msra.mxu0 0.0
  %1266 = vmatprep.subr.mxu0 0.0
  %1267 = vmatpush1.msra.mxu0 0.0
  %1268 = vmatprep.subr.mxu0 0.0
  %1269 = vmatpush1.msra.mxu0 0.0
  %1270 = vmatprep.mubr.f32.mxu0 0.0
  %1271 = vmatmul.mubr.f32.gmra.mrb[0].mxu0 %v1186
  %v1272 = vpop.f32.mrb[0].mxu0
  %v1273 = vadd.f32 0.0, %v1272
  %v1274 = vpop.f32.mrb[0].mxu0
  %1275 = vmatprep.mubr.f32.mxu0 0.0
  %1276 = vmatmul.mubr.f32.gmra.mrb[0].mxu0 %v1187
  %v1277 = vpop.f32.mrb[0].mxu0
  %v1278 = vadd.f32 0.0, %v1277
  %v1279 = vpop.f32.mrb[0].mxu0
  %1280 = vmatprep.mubr.f32.mxu0 0.0
  %1281 = vmatmul.mubr.f32.gmra.mrb[0].mxu0 %v1188
  %v1282 = vpop.f32.mrb[0].mxu0
  %v1283 = vadd.f32 0.0, %v1282
  %v1284 = vpop.f32.mrb[0].mxu0
  %1285 = vmatprep.mubr.f32.mxu0 0.0
  %1286 = vmatmul.mubr.f32.gmra.mrb[0].mxu0 %v1189
  %v1287 = vpop.f32.mrb[0].mxu0
  %v1288 = vadd.f32 0.0, %v1287
  %v1289 = vpop.f32.mrb[0].mxu0
  %1290 = vdwg.mxu0
  %1295 = vrot.lane.b32.xlu0 %v955, 64
  %v1296 = vpop.permute.xlu0 %1295
  %1297 = vrot.lane.b32.xlu0 %v960, 64
  %v1298 = vpop.permute.xlu0 %1297
  %1299 = vrot.lane.b32.xlu0 %v965, 64
  %v1300 = vpop.permute.xlu0 %1299
  %1301 = vrot.lane.b32.xlu0 %v970, 64
  %v1302 = vpop.permute.xlu0 %1301
  %v1307 = vadd.f32 %v794, %v1296
  %v1308 = vadd.f32 %v795, %v1298
  %v1309 = vadd.f32 %v796, %v1300
  %v1310 = vadd.f32 %v797, %v1302
  %v1311 = vadd.f32 %v1307, %v1158
  %v1312 = vadd.f32 %v1308, %v1164
  %v1313 = vadd.f32 %v1309, %v1170
  %v1314 = vadd.f32 %v1310, %v1176
  %v1315 = vadd.f32 %v1311, %v1273
  %v1316 = vadd.f32 %v1312, %v1278
  %v1317 = vadd.f32 %v1313, %v1283
  %v1318 = vadd.f32 %v1314, %v1288
  %1319 = vrot.lane.b32.xlu0 %v770, 125
  %v1320 = vpop.permute.xlu0 %1319
  %v1322 = vadd.f32 %v1315, %v1320
  %v1323 = vadd.f32 %v1316, %v1320
  %v1324 = vadd.f32 %v1317, %v1320
  %v1325 = vadd.f32 %v1318, %v1320
  %v1326 = vmul.f32 %v1322, 0.001953125
  %v1327 = vmul.f32 %v1323, 0.001953125
  %v1328 = vmul.f32 %v1324, 0.001953125
  %v1329 = vmul.f32 %v1325, 0.001953125
  %v1330 = vxor.u32 %v1326, 2147483648
  %v1331 = vxor.u32 %v1327, 2147483648
  %v1332 = vxor.u32 %v1328, 2147483648
  %v1333 = vxor.u32 %v1329, 2147483648
  %v1334 = vmul.f32 %v1330, 1.442695
  %v1335 = vpow.pop %v1334
  %v1336 = vmul.f32 %v1331, 1.442695
  %v1337 = vpow.pop %v1336
  %v1338 = vmul.f32 %v1332, 1.442695
  %v1339 = vpow.pop %v1338
  %v1340 = vmul.f32 %v1333, 1.442695
  %v1341 = vpow.pop %v1340
  %v1342 = vadd.f32 %v1335, 1.0
  %v1343 = vadd.f32 %v1337, 1.0
  %v1344 = vadd.f32 %v1339, 1.0
  %v1345 = vadd.f32 %v1341, 1.0
  %v1346 = vrcp.pop %v1342
  %v1347 = vmul.f32 1.0, %v1346
  %v1348 = vrcp.pop %v1343
  %v1349 = vmul.f32 1.0, %v1348
  %v1350 = vrcp.pop %v1344
  %v1351 = vmul.f32 1.0, %v1350
  %v1352 = vrcp.pop %v1345
  %v1353 = vmul.f32 1.0, %v1352
  %vm1354 = vcmask 7168
  %1355 = vst.msk [vmem:[%s7] sm:$0xff] %vm1354, %v1347
  %1356 = vst.msk [vmem:[%s7 + $0x8] sm:$0xff] %vm1354, %v1349
  %1357 = vst.msk [vmem:[%s7 + $0x10] sm:$0xff] %vm1354, %v1351
  %1358 = vst.msk [vmem:[%s7 + $0x18] sm:$0xff] %vm1354, %v1353
  // Predicated region
  $region30: #{tpu_custom_call.1} parent=0 // pred_check
    _
  $region31: #{tpu_custom_call.1} parent=0 // pred_check_branch
    %1360 = sbr.rel (0) target = $region33
  $region32: #{tpu_custom_call.1} parent=0 // pred_region
    _
  $region33: #{tpu_custom_call.1} parent=0 // pred_fallthru
    _
  // Predicated region
  $region34: #{tpu_custom_call.1} parent=0 // pred_check
    _
  $region35: #{tpu_custom_call.1} parent=0 // pred_check_branch
    %1362 = sbr.rel (0) target = $region37
  $region36: #{tpu_custom_call.1} parent=0 // pred_region
    _
  $region37: #{tpu_custom_call.1} parent=0 // pred_fallthru
    _

</llo_original>
